<compile_context>
chip_gen: v7x
topology: tpu7x:2x2x1
jax: 0.10.0
libtpu: 0.0.40
codegen_flags: <defaults>
</compile_context>

<pallas_src>
import math
from functools import partial

import numpy as np
import jax
import jax.numpy as jnp
from jax.experimental import pallas as pl
from jax.experimental.pallas import tpu as pltpu

_EPS = 1e-6


# ---------------------------------------------------------------------------
# Host-side setup
# ---------------------------------------------------------------------------

def _bilinear_align_corners(w, out_h, out_w):
    """F.interpolate(..., mode='bilinear', align_corners=True) over dims (1, 2)."""
    _, in_h, in_w, _ = w.shape
    ys = jnp.linspace(0.0, in_h - 1.0, out_h)
    xs = jnp.linspace(0.0, in_w - 1.0, out_w)
    y0 = jnp.floor(ys).astype(jnp.int32)
    y1 = jnp.minimum(y0 + 1, in_h - 1)
    fy = (ys - y0.astype(jnp.float32))[None, :, None, None]
    x0 = jnp.floor(xs).astype(jnp.int32)
    x1 = jnp.minimum(x0 + 1, in_w - 1)
    fx = (xs - x0.astype(jnp.float32))[None, None, :, None]
    wy = w[:, y0] * (1.0 - fy) + w[:, y1] * fy
    out = wy[:, :, x0] * (1.0 - fx) + wy[:, :, x1] * fx
    return out


def _spectral_operators(H, W):
    """Block-structured real-DFT operators for rfft2/irfft2 (norm='ortho') on
    flattened spatial layouts, so every FFT stage is a plain 2-D matmul
    contracting the last (lane) axis - no in-kernel transposes, lane slices or
    tiled-dim reshapes.

      layouts:  p  = h*W  + w   (spatial, matches the flattened input)
                q1 = h*Wf + f   (half spectrum, row-major over image rows h)
                q2 = f*H  + m   (half spectrum, freq-major; m = H-axis freq)
    """
    Wf = W // 2 + 1
    HW, HWf = H * W, H * Wf
    h_p, w_p = np.divmod(np.arange(HW), W)
    h_q, f_q = np.divmod(np.arange(HWf), Wf)
    f_r, m_r = np.divmod(np.arange(HWf), H)

    # stage 1: rfft along W    (p -> q1)
    ang = 2.0 * np.pi * np.outer(w_p, f_q) / W
    keep = (h_p[:, None] == h_q[None, :]).astype(np.float64)
    g1c = keep * np.cos(ang) / np.sqrt(W)
    g1s = keep * (-np.sin(ang)) / np.sqrt(W)

    # stage 2: fft along H     (q1 -> q2)
    ang = 2.0 * np.pi * np.outer(h_q, m_r) / H
    keep = (f_q[:, None] == f_r[None, :]).astype(np.float64)
    g2c = keep * np.cos(ang) / np.sqrt(H)
    g2s = keep * np.sin(ang) / np.sqrt(H)

    # stage 3: ifft along H    (q2 -> q2, freq m -> spatial h)
    ang = 2.0 * np.pi * np.outer(m_r, m_r) / H
    keep = (f_r[:, None] == f_r[None, :]).astype(np.float64)
    g3c = keep * np.cos(ang) / np.sqrt(H)
    g3s = keep * np.sin(ang) / np.sqrt(H)

    # stage 4: irfft along W   (q2 -> p); alpha folds the Hermitian symmetry
    alpha = np.full(HWf, 2.0)
    alpha[f_r == 0] = 1.0
    if W % 2 == 0:
        alpha[f_r == W // 2] = 1.0
    ang = 2.0 * np.pi * np.outer(f_r, w_p) / W
    keep = (m_r[:, None] == h_p[None, :]).astype(np.float64)
    g4c = keep * (alpha[:, None] * np.cos(ang)) / np.sqrt(W)
    g4s = keep * (alpha[:, None] * np.sin(ang)) / np.sqrt(W)

    mats = (g1c, g1s, g2c, g2s, g3c, g3s, g4c, g4s)
    return tuple(jnp.asarray(m, jnp.float32) for m in mats)


def init_params(key, dim, h=14, w=8):
    c2 = dim // 2
    k_dw, k_cw = jax.random.split(key)
    bound = 1.0 / math.sqrt(9.0)  # conv fan_in = 1 * 3 * 3
    return {
        'pre_g': jnp.ones((dim,), jnp.float32),
        'pre_b': jnp.zeros((dim,), jnp.float32),
        'post_g': jnp.ones((dim,), jnp.float32),
        'post_b': jnp.zeros((dim,), jnp.float32),
        'dw_weight': jax.random.uniform(k_dw, (c2, 1, 3, 3), jnp.float32,
                                        -bound, bound),
        'complex_weight': 0.02 * jax.random.normal(k_cw, (c2, h, w, 2), jnp.float32),
    }


# ---------------------------------------------------------------------------
# Pallas kernel
# ---------------------------------------------------------------------------

def _glf_kernel(x_ref, par_ref, wmask_ref, wq_ref,
                g1c_ref, g1s_ref, g2c_ref, g2s_ref,
                g3c_ref, g3s_ref, g4c_ref, g4s_ref,
                o_ref, *, W):
    f32 = jnp.float32
    x = x_ref[...]                           # (Bt, C, HW) lane-dense
    Bt, C, HW = x.shape
    C2 = C // 2
    N2 = Bt * C2

    par = par_ref[...]                       # (C, 15) packed per-channel scalars

    def cvec(col, rows=C):                   # -> (1, rows, 1) channel broadcast
        return par[:rows, col:col + 1][None]

    # ---- pre-norm: LayerNorm over the channel axis (channels_first) --------
    u = jnp.mean(x, axis=1, keepdims=True)
    d = x - u
    var = jnp.mean(d * d, axis=1, keepdims=True)
    xn = d * jax.lax.rsqrt(var + _EPS)
    xn = cvec(0) * xn + cvec(1)

    x1 = xn[:, :C2]                          # local (conv) branch
    x2 = xn[:, C2:]                          # global (spectral) branch

    # ---- branch 2: rfft2 * complex weight * irfft2 (norm='ortho') ----------
    # Run first so its temporaries are dead before the conv accumulation and
    # post-LN.  Every stage is a plain last-axis 2-D matmul against a
    # block-diagonal real-DFT operator; no transposes / lane slices needed.
    def mm(a, g_ref):
        return jax.lax.dot_general(a, g_ref[...], (((1,), (0,)), ((), ())),
                                   preferred_element_type=f32)

    x2m = x2.reshape(N2, HW)                 # leading-dim merge only
    sr = mm(x2m, g1c_ref)                    # (N2, H*Wf)  Re rfft_W
    si = mm(x2m, g1s_ref)                    #             Im rfft_W
    yr = mm(sr, g2c_ref) + mm(si, g2s_ref)   # Re fft_H    (freq-major layout)
    yi = mm(si, g2c_ref) - mm(sr, g2s_ref)   # Im fft_H
    wr = wq_ref[0]                           # (N2, H*Wf) complex weight (host-tiled)
    wi = wq_ref[1]
    zr = yr * wr - yi * wi
    zi = yr * wi + yi * wr
    ar = mm(zr, g3c_ref) - mm(zi, g3s_ref)   # Re ifft_H
    ai = mm(zr, g3s_ref) + mm(zi, g3c_ref)   # Im ifft_H
    x2o = (mm(ar, g4c_ref) - mm(ai, g4s_ref)).reshape(Bt, C2, HW)  # irfft_W

    # ---- branch 1: depthwise 3x3 conv, padding=1, on the flat layout -------
    # pad the flattened row axis once; each tap is a static shifted slice.
    # Row-wrap columns are killed by the two host-built 0/1 masks.
    pad = W + 1
    zpad = jnp.zeros((Bt, C2, pad), f32)
    xp = jnp.concatenate([zpad, x1, zpad], axis=-1)     # (Bt, C2, HW + 2W + 2)
    wmask = wmask_ref[...]                              # (2, HW)
    m_neg = wmask[0:1][None]                            # valid where w-1 >= 0
    m_pos = wmask[1:2][None]                            # valid where w+1 <  W
    x1o = jnp.zeros_like(x1)
    for k in range(9):
        dh, dw = k // 3 - 1, k % 3 - 1
        if dh == 0 and dw == 0:
            shift = x1
        else:
            s0 = pad + dh * W + dw
            shift = xp[:, :, s0:s0 + HW]
        if dw == -1:
            shift = shift * m_neg
        elif dw == 1:
            shift = shift * m_pos
        x1o = x1o + cvec(6 + k, C2) * shift

    # ---- post-norm over the interleaved channels ----------------------------
    # LN stats are channel-permutation invariant, so compute them from the two
    # halves directly; gamma/beta arrive pre-split by output-channel parity.
    inv_c = 1.0 / C
    mu = (jnp.sum(x1o, axis=1, keepdims=True)
          + jnp.sum(x2o, axis=1, keepdims=True)) * inv_c
    d1 = x1o - mu
    d2 = x2o - mu
    var2 = (jnp.sum(d1 * d1, axis=1, keepdims=True)
            + jnp.sum(d2 * d2, axis=1, keepdims=True)) * inv_c
    inv_std = jax.lax.rsqrt(var2 + _EPS)
    # Dense, unmasked stores; channel interleave happens in the wrapper.
    o_ref[:, 0, :, :] = cvec(2, C2) * (d1 * inv_std) + cvec(4, C2)
    o_ref[:, 1, :, :] = cvec(3, C2) * (d2 * inv_std) + cvec(5, C2)


# ---------------------------------------------------------------------------
# Wrapper
# ---------------------------------------------------------------------------

def global_local_filter(x, params, *, block_batch=None):
    """GlobalLocalFilter forward, NCHW in / NCHW out."""
    B, C, H, W = x.shape
    assert C % 2 == 0
    C2 = C // 2
    Wf = W // 2 + 1
    HW, HWf = H * W, H * Wf
    x = x.astype(jnp.float32)

    # keep the batch grid length >= 2 where possible so both v7x TensorCores
    # get work; v5e/v6e (1 TC) are unaffected.
    if block_batch is None:
        cands = [bt for bt in (8, 4, 2, 1) if B % bt == 0 and B // bt >= 2]
        block_batch = cands[0] if cands else B
    Bt = block_batch
    assert B % Bt == 0
    N2 = Bt * C2

    g1c, g1s, g2c, g2s, g3c, g3s, g4c, g4s = _spectral_operators(H, W)

    # complex global filter: bilinear align_corners=True resize to the (H, Wf)
    # rfft2 grid, flattened to the kernel's freq-major layout (q2 = f*H + m)
    # and tiled over the per-block batch so the in-kernel multiply is a plain
    # 2-D elementwise op.
    w_cplx = params['complex_weight'].astype(jnp.float32)
    if w_cplx.shape[1:3] != (H, Wf):
        w_cplx = _bilinear_align_corners(w_cplx, H, Wf)
    wr = jnp.transpose(w_cplx[..., 0], (0, 2, 1)).reshape(C2, HWf)
    wi = jnp.transpose(w_cplx[..., 1], (0, 2, 1)).reshape(C2, HWf)
    wq = jnp.tile(jnp.stack([wr, wi], axis=0), (1, Bt, 1))      # (2, N2, HWf)

    # all per-channel scalars packed into one small slab (C, 15):
    #   col 0/1  : pre-LN gamma / beta (per C)
    #   col 2/3  : post-LN gamma for even / odd output channels (per C2)
    #   col 4/5  : post-LN beta  for even / odd output channels (per C2)
    #   col 6..14: the 9 depthwise 3x3 taps (per C2)
    taps = params['dw_weight'][:, 0].reshape(C2, 9)

    def c2col(v):
        return jnp.zeros((C,), jnp.float32).at[:C2].set(v)

    cols = [params['pre_g'], params['pre_b'],
            c2col(params['post_g'][0::2]), c2col(params['post_g'][1::2]),
            c2col(params['post_b'][0::2]), c2col(params['post_b'][1::2])]
    cols += [c2col(taps[:, k]) for k in range(9)]
    slab = jnp.stack(cols, axis=1).astype(jnp.float32)           # (C, 15)

    # column-validity masks for the flattened 3x3 shifts (host-built, f32)
    widx = np.arange(HW) % W
    wmask = jnp.asarray(np.stack([widx >= 1, widx <= W - 2]).astype(np.float32))

    x_flat = x.reshape(B, C, HW)                                  # lane-dense view

    def const_spec(shape):
        nd = len(shape)
        return pl.BlockSpec(shape, lambda b, _nd=nd: (0,) * _nd)

    out = pl.pallas_call(
        partial(_glf_kernel, W=W),
        out_shape=jax.ShapeDtypeStruct((B, 2, C2, HW), jnp.float32),
        grid=(B // Bt,),
        in_specs=[
            pl.BlockSpec((Bt, C, HW), lambda b: (b, 0, 0)),
            const_spec((C, 15)),
            const_spec((2, HW)),
            const_spec((2, N2, HWf)),
            const_spec((HW, HWf)), const_spec((HW, HWf)),
            const_spec((HWf, HWf)), const_spec((HWf, HWf)),
            const_spec((HWf, HWf)), const_spec((HWf, HWf)),
            const_spec((HWf, HW)), const_spec((HWf, HW)),
        ],
        out_specs=pl.BlockSpec((Bt, 2, C2, HW), lambda b: (b, 0, 0, 0)),
        compiler_params=pltpu.CompilerParams(
            dimension_semantics=("parallel",),
            vmem_limit_bytes=32 * 1024 * 1024),
    )(x_flat, slab, wmask, wq, g1c, g1s, g2c, g2s, g3c, g3s, g4c, g4s)

    # Interleave the two branch halves back into channel order (even <- conv,
    # odd <- spectral).  Wrapper-side layout transpose; keeps the in-kernel
    # stores fully lane-dense/unmasked.  (Alternative: strided in-kernel store
    # via o_ref[:, pl.ds(0, C2, stride=2)] to keep the interleave on-chip.)
    return jnp.transpose(out, (0, 2, 1, 3)).reshape(B, C, H, W)


# ---------------------------------------------------------------------------
# Pure numpy reference (mirrors the PyTorch forward) for a self-check
# ---------------------------------------------------------------------------

def reference_forward(x, params):
    x = np.asarray(x, np.float32)
    B, C, H, W = x.shape
    C2 = C // 2
    pre_g = np.asarray(params['pre_g']); pre_b = np.asarray(params['pre_b'])
    post_g = np.asarray(params['post_g']); post_b = np.asarray(params['post_b'])

    u = x.mean(1, keepdims=True)
    s = ((x - u) ** 2).mean(1, keepdims=True)
    xn = pre_g[None, :, None, None] * ((x - u) / np.sqrt(s + _EPS)) \
        + pre_b[None, :, None, None]

    x1, x2 = xn[:, :C2], xn[:, C2:]

    dw = np.asarray(params['dw_weight'])[:, 0]          # (C2, 3, 3)
    xp = np.pad(x1, ((0, 0), (0, 0), (1, 1), (1, 1)))
    x1o = np.zeros_like(x1)
    for di in range(3):
        for dj in range(3):
            tap = dw[:, di, dj][None, :, None, None]
            x1o = x1o + tap * xp[:, :, di:di + H, dj:dj + W]

    X2 = np.fft.rfft2(x2.astype(np.float32), axes=(2, 3), norm='ortho')
    # NOTE: the align_corners=True resize helper is shared with the kernel
    # path (not independently cross-checked against torch here).
    w_int = np.asarray(_bilinear_align_corners(
        jnp.asarray(params['complex_weight'], jnp.float32), H, W // 2 + 1))
    wc = w_int[..., 0] + 1j * w_int[..., 1]
    x2o = np.fft.irfft2(X2 * wc[None], s=(H, W), axes=(2, 3),
                        norm='ortho').astype(np.float32)

    merged = np.stack([x1o, x2o], axis=2).reshape(B, C, H, W)
    u2 = merged.mean(1, keepdims=True)
    s2 = ((merged - u2) ** 2).mean(1, keepdims=True)
    y = (merged - u2) / np.sqrt(s2 + _EPS)
    return post_g[None, :, None, None] * y + post_b[None, :, None, None]


if __name__ == "__main__":
    key = jax.random.PRNGKey(0)
    k_x, k_p = jax.random.split(key)
    B, dim, H, W = 2, 4, 16, 16
    x = jax.random.normal(k_x, (B, dim, H, W), jnp.float32)
    params = init_params(k_p, dim, h=14, w=8)

    out = jax.block_until_ready(global_local_filter(x, params))
    assert out.shape == (B, dim, H, W)

    ref = reference_forward(np.asarray(x), params)
    max_err = float(np.max(np.abs(np.asarray(out) - ref)))
    if max_err > 2e-2:
        raise AssertionError(f"Pallas output mismatch vs reference, max_err={max_err}")
    print("KERNEL_OK")
</pallas_src>

<mosaic_0001>
module attributes {stable_mosaic.version = 11 : i64} {
  func.func @_glf_kernel(%arg0: i32, %arg1: memref<1x4x256xf32, #tpu.memory_space<vmem>>, %arg2: memref<4x15xf32, #tpu.memory_space<vmem>>, %arg3: memref<2x256xf32, #tpu.memory_space<vmem>>, %arg4: memref<2x2x144xf32, #tpu.memory_space<vmem>>, %arg5: memref<256x144xf32, #tpu.memory_space<vmem>>, %arg6: memref<256x144xf32, #tpu.memory_space<vmem>>, %arg7: memref<144x144xf32, #tpu.memory_space<vmem>>, %arg8: memref<144x144xf32, #tpu.memory_space<vmem>>, %arg9: memref<144x144xf32, #tpu.memory_space<vmem>>, %arg10: memref<144x144xf32, #tpu.memory_space<vmem>>, %arg11: memref<144x256xf32, #tpu.memory_space<vmem>>, %arg12: memref<144x256xf32, #tpu.memory_space<vmem>>, %arg13: memref<1x2x2x256xf32, #tpu.memory_space<vmem>>) attributes {dimension_semantics = [#tpu.dimension_semantics<parallel>], iteration_bounds = array<i64: 2>, scalar_prefetch = 0 : i64, scratch_operands = 0 : i64, tpu.core_type = #tpu.core_type<tc>, window_params = [{transform_indices = @transform_0, window_bounds = array<i64: 1, 4, 256>}, {pipeline_mode = #tpu.pipeline_mode<synchronous>, transform_indices = @transform_1, window_bounds = array<i64: 4, 15>}, {pipeline_mode = #tpu.pipeline_mode<synchronous>, transform_indices = @transform_2, window_bounds = array<i64: 2, 256>}, {pipeline_mode = #tpu.pipeline_mode<synchronous>, transform_indices = @transform_3, window_bounds = array<i64: 2, 2, 144>}, {pipeline_mode = #tpu.pipeline_mode<synchronous>, transform_indices = @transform_4, window_bounds = array<i64: 256, 144>}, {pipeline_mode = #tpu.pipeline_mode<synchronous>, transform_indices = @transform_5, window_bounds = array<i64: 256, 144>}, {pipeline_mode = #tpu.pipeline_mode<synchronous>, transform_indices = @transform_6, window_bounds = array<i64: 144, 144>}, {pipeline_mode = #tpu.pipeline_mode<synchronous>, transform_indices = @transform_7, window_bounds = array<i64: 144, 144>}, {pipeline_mode = #tpu.pipeline_mode<synchronous>, transform_indices = @transform_8, window_bounds = array<i64: 144, 144>}, {pipeline_mode = #tpu.pipeline_mode<synchronous>, transform_indices = @transform_9, window_bounds = array<i64: 144, 144>}, {pipeline_mode = #tpu.pipeline_mode<synchronous>, transform_indices = @transform_10, window_bounds = array<i64: 144, 256>}, {pipeline_mode = #tpu.pipeline_mode<synchronous>, transform_indices = @transform_11, window_bounds = array<i64: 144, 256>}, {transform_indices = @transform_12, window_bounds = array<i64: 1, 2, 2, 256>}]} {
    %c0 = arith.constant 0 : index
    %c0_0 = arith.constant 0 : index
    %c0_1 = arith.constant 0 : index
    %0 = vector.load %arg1[%c0, %c0_0, %c0_1] : memref<1x4x256xf32, #tpu.memory_space<vmem>>, vector<1x4x256xf32>
    %c0_2 = arith.constant 0 : index
    %c0_3 = arith.constant 0 : index
    %1 = vector.load %arg2[%c0_2, %c0_3] : memref<4x15xf32, #tpu.memory_space<vmem>>, vector<4x15xf32>
    %cst = arith.constant dense<0.000000e+00> : vector<1x256xf32>
    %2 = vector.multi_reduction <add>, %0, %cst [1] : vector<1x4x256xf32> to vector<1x256xf32>
    %3 = vector.shape_cast %2 : vector<1x256xf32> to vector<1x1x256xf32>
    %cst_4 = arith.constant 4.000000e+00 : f32
    %4 = vector.broadcast %cst_4 : f32 to vector<1x1x256xf32>
    %5 = arith.divf %3, %4 : vector<1x1x256xf32>
    %6 = vector.broadcast %5 : vector<1x1x256xf32> to vector<1x4x256xf32>
    %7 = arith.subf %0, %6 : vector<1x4x256xf32>
    %8 = arith.mulf %7, %7 : vector<1x4x256xf32>
    %cst_5 = arith.constant dense<0.000000e+00> : vector<1x256xf32>
    %9 = vector.multi_reduction <add>, %8, %cst_5 [1] : vector<1x4x256xf32> to vector<1x256xf32>
    %10 = vector.shape_cast %9 : vector<1x256xf32> to vector<1x1x256xf32>
    %cst_6 = arith.constant 4.000000e+00 : f32
    %11 = vector.broadcast %cst_6 : f32 to vector<1x1x256xf32>
    %12 = arith.divf %10, %11 : vector<1x1x256xf32>
    %cst_7 = arith.constant 9.99999997E-7 : f32
    %13 = vector.broadcast %cst_7 : f32 to vector<1x1x256xf32>
    %14 = arith.addf %12, %13 : vector<1x1x256xf32>
    %15 = math.rsqrt %14 : vector<1x1x256xf32>
    %16 = vector.broadcast %15 : vector<1x1x256xf32> to vector<1x4x256xf32>
    %17 = arith.mulf %7, %16 : vector<1x4x256xf32>
    %18 = vector.extract_strided_slice %1 {offsets = [0, 0], sizes = [4, 1], strides = [1, 1]} : vector<4x15xf32> to vector<4x1xf32>
    %19 = vector.shape_cast %18 : vector<4x1xf32> to vector<1x4x1xf32>
    %20 = vector.broadcast %19 : vector<1x4x1xf32> to vector<1x4x256xf32>
    %21 = arith.mulf %20, %17 : vector<1x4x256xf32>
    %22 = vector.extract_strided_slice %1 {offsets = [0, 1], sizes = [4, 1], strides = [1, 1]} : vector<4x15xf32> to vector<4x1xf32>
    %23 = vector.shape_cast %22 : vector<4x1xf32> to vector<1x4x1xf32>
    %24 = vector.broadcast %23 : vector<1x4x1xf32> to vector<1x4x256xf32>
    %25 = arith.addf %21, %24 : vector<1x4x256xf32>
    %26 = vector.extract_strided_slice %25 {offsets = [0, 0, 0], sizes = [1, 2, 256], strides = [1, 1, 1]} : vector<1x4x256xf32> to vector<1x2x256xf32>
    %27 = vector.extract_strided_slice %25 {offsets = [0, 2, 0], sizes = [1, 2, 256], strides = [1, 1, 1]} : vector<1x4x256xf32> to vector<1x2x256xf32>
    %28 = vector.shape_cast %27 : vector<1x2x256xf32> to vector<2x256xf32>
    %c0_8 = arith.constant 0 : index
    %c0_9 = arith.constant 0 : index
    %29 = vector.load %arg5[%c0_8, %c0_9] : memref<256x144xf32, #tpu.memory_space<vmem>>, vector<256x144xf32>
    %cst_10 = arith.constant dense<0.000000e+00> : vector<2x144xf32>
    %30 = tpu.matmul %28, %29, %cst_10 {dimension_numbers = #tpu.dot_dimension_numbers<[1], [0], [0], [1], [0, 0, 1, 1], [], []>} : vector<2x256xf32>, vector<256x144xf32>, vector<2x144xf32> -> vector<2x144xf32>
    %c0_11 = arith.constant 0 : index
    %c0_12 = arith.constant 0 : index
    %31 = vector.load %arg6[%c0_11, %c0_12] : memref<256x144xf32, #tpu.memory_space<vmem>>, vector<256x144xf32>
    %cst_13 = arith.constant dense<0.000000e+00> : vector<2x144xf32>
    %32 = tpu.matmul %28, %31, %cst_13 {dimension_numbers = #tpu.dot_dimension_numbers<[1], [0], [0], [1], [0, 0, 1, 1], [], []>} : vector<2x256xf32>, vector<256x144xf32>, vector<2x144xf32> -> vector<2x144xf32>
    %c0_14 = arith.constant 0 : index
    %c0_15 = arith.constant 0 : index
    %33 = vector.load %arg7[%c0_14, %c0_15] : memref<144x144xf32, #tpu.memory_space<vmem>>, vector<144x144xf32>
    %cst_16 = arith.constant dense<0.000000e+00> : vector<2x144xf32>
    %34 = tpu.matmul %30, %33, %cst_16 {dimension_numbers = #tpu.dot_dimension_numbers<[1], [0], [0], [1], [0, 0, 1, 1], [], []>} : vector<2x144xf32>, vector<144x144xf32>, vector<2x144xf32> -> vector<2x144xf32>
    %c0_17 = arith.constant 0 : index
    %c0_18 = arith.constant 0 : index
    %35 = vector.load %arg8[%c0_17, %c0_18] : memref<144x144xf32, #tpu.memory_space<vmem>>, vector<144x144xf32>
    %cst_19 = arith.constant dense<0.000000e+00> : vector<2x144xf32>
    %36 = tpu.matmul %32, %35, %cst_19 {dimension_numbers = #tpu.dot_dimension_numbers<[1], [0], [0], [1], [0, 0, 1, 1], [], []>} : vector<2x144xf32>, vector<144x144xf32>, vector<2x144xf32> -> vector<2x144xf32>
    %37 = arith.addf %34, %36 : vector<2x144xf32>
    %c0_20 = arith.constant 0 : index
    %c0_21 = arith.constant 0 : index
    %38 = vector.load %arg7[%c0_20, %c0_21] : memref<144x144xf32, #tpu.memory_space<vmem>>, vector<144x144xf32>
    %cst_22 = arith.constant dense<0.000000e+00> : vector<2x144xf32>
    %39 = tpu.matmul %32, %38, %cst_22 {dimension_numbers = #tpu.dot_dimension_numbers<[1], [0], [0], [1], [0, 0, 1, 1], [], []>} : vector<2x144xf32>, vector<144x144xf32>, vector<2x144xf32> -> vector<2x144xf32>
    %c0_23 = arith.constant 0 : index
    %c0_24 = arith.constant 0 : index
    %40 = vector.load %arg8[%c0_23, %c0_24] : memref<144x144xf32, #tpu.memory_space<vmem>>, vector<144x144xf32>
    %cst_25 = arith.constant dense<0.000000e+00> : vector<2x144xf32>
    %41 = tpu.matmul %30, %40, %cst_25 {dimension_numbers = #tpu.dot_dimension_numbers<[1], [0], [0], [1], [0, 0, 1, 1], [], []>} : vector<2x144xf32>, vector<144x144xf32>, vector<2x144xf32> -> vector<2x144xf32>
    %42 = arith.subf %39, %41 : vector<2x144xf32>
    %c0_26 = arith.constant 0 : index
    %c0_27 = arith.constant 0 : index
    %c0_28 = arith.constant 0 : index
    %43 = vector.load %arg4[%c0_26, %c0_27, %c0_28] : memref<2x2x144xf32, #tpu.memory_space<vmem>>, vector<1x2x144xf32>
    %44 = vector.shape_cast %43 : vector<1x2x144xf32> to vector<2x144xf32>
    %c1 = arith.constant 1 : index
    %c0_29 = arith.constant 0 : index
    %c0_30 = arith.constant 0 : index
    %45 = vector.load %arg4[%c1, %c0_29, %c0_30] : memref<2x2x144xf32, #tpu.memory_space<vmem>>, vector<1x2x144xf32>
    %46 = vector.shape_cast %45 : vector<1x2x144xf32> to vector<2x144xf32>
    %47 = arith.mulf %37, %44 : vector<2x144xf32>
    %48 = arith.mulf %42, %46 : vector<2x144xf32>
    %49 = arith.subf %47, %48 : vector<2x144xf32>
    %50 = arith.mulf %37, %46 : vector<2x144xf32>
    %51 = arith.mulf %42, %44 : vector<2x144xf32>
    %52 = arith.addf %50, %51 : vector<2x144xf32>
    %c0_31 = arith.constant 0 : index
    %c0_32 = arith.constant 0 : index
    %53 = vector.load %arg9[%c0_31, %c0_32] : memref<144x144xf32, #tpu.memory_space<vmem>>, vector<144x144xf32>
    %cst_33 = arith.constant dense<0.000000e+00> : vector<2x144xf32>
    %54 = tpu.matmul %49, %53, %cst_33 {dimension_numbers = #tpu.dot_dimension_numbers<[1], [0], [0], [1], [0, 0, 1, 1], [], []>} : vector<2x144xf32>, vector<144x144xf32>, vector<2x144xf32> -> vector<2x144xf32>
    %c0_34 = arith.constant 0 : index
    %c0_35 = arith.constant 0 : index
    %55 = vector.load %arg10[%c0_34, %c0_35] : memref<144x144xf32, #tpu.memory_space<vmem>>, vector<144x144xf32>
    %cst_36 = arith.constant dense<0.000000e+00> : vector<2x144xf32>
    %56 = tpu.matmul %52, %55, %cst_36 {dimension_numbers = #tpu.dot_dimension_numbers<[1], [0], [0], [1], [0, 0, 1, 1], [], []>} : vector<2x144xf32>, vector<144x144xf32>, vector<2x144xf32> -> vector<2x144xf32>
    %57 = arith.subf %54, %56 : vector<2x144xf32>
    %c0_37 = arith.constant 0 : index
    %c0_38 = arith.constant 0 : index
    %58 = vector.load %arg10[%c0_37, %c0_38] : memref<144x144xf32, #tpu.memory_space<vmem>>, vector<144x144xf32>
    %cst_39 = arith.constant dense<0.000000e+00> : vector<2x144xf32>
    %59 = tpu.matmul %49, %58, %cst_39 {dimension_numbers = #tpu.dot_dimension_numbers<[1], [0], [0], [1], [0, 0, 1, 1], [], []>} : vector<2x144xf32>, vector<144x144xf32>, vector<2x144xf32> -> vector<2x144xf32>
    %c0_40 = arith.constant 0 : index
    %c0_41 = arith.constant 0 : index
    %60 = vector.load %arg9[%c0_40, %c0_41] : memref<144x144xf32, #tpu.memory_space<vmem>>, vector<144x144xf32>
    %cst_42 = arith.constant dense<0.000000e+00> : vector<2x144xf32>
    %61 = tpu.matmul %52, %60, %cst_42 {dimension_numbers = #tpu.dot_dimension_numbers<[1], [0], [0], [1], [0, 0, 1, 1], [], []>} : vector<2x144xf32>, vector<144x144xf32>, vector<2x144xf32> -> vector<2x144xf32>
    %62 = arith.addf %59, %61 : vector<2x144xf32>
    %c0_43 = arith.constant 0 : index
    %c0_44 = arith.constant 0 : index
    %63 = vector.load %arg11[%c0_43, %c0_44] : memref<144x256xf32, #tpu.memory_space<vmem>>, vector<144x256xf32>
    %cst_45 = arith.constant dense<0.000000e+00> : vector<2x256xf32>
    %64 = tpu.matmul %57, %63, %cst_45 {dimension_numbers = #tpu.dot_dimension_numbers<[1], [0], [0], [1], [0, 0, 1, 1], [], []>} : vector<2x144xf32>, vector<144x256xf32>, vector<2x256xf32> -> vector<2x256xf32>
    %c0_46 = arith.constant 0 : index
    %c0_47 = arith.constant 0 : index
    %65 = vector.load %arg12[%c0_46, %c0_47] : memref<144x256xf32, #tpu.memory_space<vmem>>, vector<144x256xf32>
    %cst_48 = arith.constant dense<0.000000e+00> : vector<2x256xf32>
    %66 = tpu.matmul %62, %65, %cst_48 {dimension_numbers = #tpu.dot_dimension_numbers<[1], [0], [0], [1], [0, 0, 1, 1], [], []>} : vector<2x144xf32>, vector<144x256xf32>, vector<2x256xf32> -> vector<2x256xf32>
    %67 = arith.subf %64, %66 : vector<2x256xf32>
    %68 = vector.shape_cast %67 : vector<2x256xf32> to vector<1x2x256xf32>
    %cst_49 = arith.constant 0.000000e+00 : f32
    %69 = vector.broadcast %cst_49 : f32 to vector<1x2x17xf32>
    %70 = tpu.concatenate %69, %26, %69 in 2 : vector<1x2x17xf32>, vector<1x2x256xf32>, vector<1x2x17xf32> -> vector<1x2x290xf32>
    %c0_50 = arith.constant 0 : index
    %c0_51 = arith.constant 0 : index
    %71 = vector.load %arg3[%c0_50, %c0_51] : memref<2x256xf32, #tpu.memory_space<vmem>>, vector<2x256xf32>
    %72 = vector.extract_strided_slice %71 {offsets = [0, 0], sizes = [1, 256], strides = [1, 1]} : vector<2x256xf32> to vector<1x256xf32>
    %73 = vector.shape_cast %72 : vector<1x256xf32> to vector<1x1x256xf32>
    %74 = vector.extract_strided_slice %71 {offsets = [1, 0], sizes = [1, 256], strides = [1, 1]} : vector<2x256xf32> to vector<1x256xf32>
    %75 = vector.shape_cast %74 : vector<1x256xf32> to vector<1x1x256xf32>
    %cst_52 = arith.constant 0.000000e+00 : f32
    %76 = vector.broadcast %cst_52 : f32 to vector<1x2x256xf32>
    %77 = vector.extract_strided_slice %70 {offsets = [0, 0, 0], sizes = [1, 2, 256], strides = [1, 1, 1]} : vector<1x2x290xf32> to vector<1x2x256xf32>
    %78 = vector.broadcast %73 : vector<1x1x256xf32> to vector<1x2x256xf32>
    %79 = arith.mulf %77, %78 : vector<1x2x256xf32>
    %80 = vector.extract_strided_slice %1 {offsets = [0, 6], sizes = [2, 1], strides = [1, 1]} : vector<4x15xf32> to vector<2x1xf32>
    %81 = vector.shape_cast %80 : vector<2x1xf32> to vector<1x2x1xf32>
    %82 = vector.broadcast %81 : vector<1x2x1xf32> to vector<1x2x256xf32>
    %83 = arith.mulf %82, %79 : vector<1x2x256xf32>
    %84 = arith.addf %76, %83 : vector<1x2x256xf32>
    %85 = vector.extract_strided_slice %70 {offsets = [0, 0, 1], sizes = [1, 2, 256], strides = [1, 1, 1]} : vector<1x2x290xf32> to vector<1x2x256xf32>
    %86 = vector.extract_strided_slice %1 {offsets = [0, 7], sizes = [2, 1], strides = [1, 1]} : vector<4x15xf32> to vector<2x1xf32>
    %87 = vector.shape_cast %86 : vector<2x1xf32> to vector<1x2x1xf32>
    %88 = vector.broadcast %87 : vector<1x2x1xf32> to vector<1x2x256xf32>
    %89 = arith.mulf %88, %85 : vector<1x2x256xf32>
    %90 = arith.addf %84, %89 : vector<1x2x256xf32>
    %91 = vector.extract_strided_slice %70 {offsets = [0, 0, 2], sizes = [1, 2, 256], strides = [1, 1, 1]} : vector<1x2x290xf32> to vector<1x2x256xf32>
    %92 = vector.broadcast %75 : vector<1x1x256xf32> to vector<1x2x256xf32>
    %93 = arith.mulf %91, %92 : vector<1x2x256xf32>
    %94 = vector.extract_strided_slice %1 {offsets = [0, 8], sizes = [2, 1], strides = [1, 1]} : vector<4x15xf32> to vector<2x1xf32>
    %95 = vector.shape_cast %94 : vector<2x1xf32> to vector<1x2x1xf32>
    %96 = vector.broadcast %95 : vector<1x2x1xf32> to vector<1x2x256xf32>
    %97 = arith.mulf %96, %93 : vector<1x2x256xf32>
    %98 = arith.addf %90, %97 : vector<1x2x256xf32>
    %99 = vector.extract_strided_slice %70 {offsets = [0, 0, 16], sizes = [1, 2, 256], strides = [1, 1, 1]} : vector<1x2x290xf32> to vector<1x2x256xf32>
    %100 = vector.broadcast %73 : vector<1x1x256xf32> to vector<1x2x256xf32>
    %101 = arith.mulf %99, %100 : vector<1x2x256xf32>
    %102 = vector.extract_strided_slice %1 {offsets = [0, 9], sizes = [2, 1], strides = [1, 1]} : vector<4x15xf32> to vector<2x1xf32>
    %103 = vector.shape_cast %102 : vector<2x1xf32> to vector<1x2x1xf32>
    %104 = vector.broadcast %103 : vector<1x2x1xf32> to vector<1x2x256xf32>
    %105 = arith.mulf %104, %101 : vector<1x2x256xf32>
    %106 = arith.addf %98, %105 : vector<1x2x256xf32>
    %107 = vector.extract_strided_slice %1 {offsets = [0, 10], sizes = [2, 1], strides = [1, 1]} : vector<4x15xf32> to vector<2x1xf32>
    %108 = vector.shape_cast %107 : vector<2x1xf32> to vector<1x2x1xf32>
    %109 = vector.broadcast %108 : vector<1x2x1xf32> to vector<1x2x256xf32>
    %110 = arith.mulf %109, %26 : vector<1x2x256xf32>
    %111 = arith.addf %106, %110 : vector<1x2x256xf32>
    %112 = vector.extract_strided_slice %70 {offsets = [0, 0, 18], sizes = [1, 2, 256], strides = [1, 1, 1]} : vector<1x2x290xf32> to vector<1x2x256xf32>
    %113 = vector.broadcast %75 : vector<1x1x256xf32> to vector<1x2x256xf32>
    %114 = arith.mulf %112, %113 : vector<1x2x256xf32>
    %115 = vector.extract_strided_slice %1 {offsets = [0, 11], sizes = [2, 1], strides = [1, 1]} : vector<4x15xf32> to vector<2x1xf32>
    %116 = vector.shape_cast %115 : vector<2x1xf32> to vector<1x2x1xf32>
    %117 = vector.broadcast %116 : vector<1x2x1xf32> to vector<1x2x256xf32>
    %118 = arith.mulf %117, %114 : vector<1x2x256xf32>
    %119 = arith.addf %111, %118 : vector<1x2x256xf32>
    %120 = vector.extract_strided_slice %70 {offsets = [0, 0, 32], sizes = [1, 2, 256], strides = [1, 1, 1]} : vector<1x2x290xf32> to vector<1x2x256xf32>
    %121 = vector.broadcast %73 : vector<1x1x256xf32> to vector<1x2x256xf32>
    %122 = arith.mulf %120, %121 : vector<1x2x256xf32>
    %123 = vector.extract_strided_slice %1 {offsets = [0, 12], sizes = [2, 1], strides = [1, 1]} : vector<4x15xf32> to vector<2x1xf32>
    %124 = vector.shape_cast %123 : vector<2x1xf32> to vector<1x2x1xf32>
    %125 = vector.broadcast %124 : vector<1x2x1xf32> to vector<1x2x256xf32>
    %126 = arith.mulf %125, %122 : vector<1x2x256xf32>
    %127 = arith.addf %119, %126 : vector<1x2x256xf32>
    %128 = vector.extract_strided_slice %70 {offsets = [0, 0, 33], sizes = [1, 2, 256], strides = [1, 1, 1]} : vector<1x2x290xf32> to vector<1x2x256xf32>
    %129 = vector.extract_strided_slice %1 {offsets = [0, 13], sizes = [2, 1], strides = [1, 1]} : vector<4x15xf32> to vector<2x1xf32>
    %130 = vector.shape_cast %129 : vector<2x1xf32> to vector<1x2x1xf32>
    %131 = vector.broadcast %130 : vector<1x2x1xf32> to vector<1x2x256xf32>
    %132 = arith.mulf %131, %128 : vector<1x2x256xf32>
    %133 = arith.addf %127, %132 : vector<1x2x256xf32>
    %134 = vector.extract_strided_slice %70 {offsets = [0, 0, 34], sizes = [1, 2, 256], strides = [1, 1, 1]} : vector<1x2x290xf32> to vector<1x2x256xf32>
    %135 = vector.broadcast %75 : vector<1x1x256xf32> to vector<1x2x256xf32>
    %136 = arith.mulf %134, %135 : vector<1x2x256xf32>
    %137 = vector.extract_strided_slice %1 {offsets = [0, 14], sizes = [2, 1], strides = [1, 1]} : vector<4x15xf32> to vector<2x1xf32>
    %138 = vector.shape_cast %137 : vector<2x1xf32> to vector<1x2x1xf32>
    %139 = vector.broadcast %138 : vector<1x2x1xf32> to vector<1x2x256xf32>
    %140 = arith.mulf %139, %136 : vector<1x2x256xf32>
    %141 = arith.addf %133, %140 : vector<1x2x256xf32>
    %cst_53 = arith.constant dense<0.000000e+00> : vector<1x256xf32>
    %142 = vector.multi_reduction <add>, %141, %cst_53 [1] : vector<1x2x256xf32> to vector<1x256xf32>
    %143 = vector.shape_cast %142 : vector<1x256xf32> to vector<1x1x256xf32>
    %cst_54 = arith.constant dense<0.000000e+00> : vector<1x256xf32>
    %144 = vector.multi_reduction <add>, %68, %cst_54 [1] : vector<1x2x256xf32> to vector<1x256xf32>
    %145 = vector.shape_cast %144 : vector<1x256xf32> to vector<1x1x256xf32>
    %146 = arith.addf %143, %145 : vector<1x1x256xf32>
    %cst_55 = arith.constant 2.500000e-01 : f32
    %147 = vector.broadcast %cst_55 : f32 to vector<1x1x256xf32>
    %148 = arith.mulf %146, %147 : vector<1x1x256xf32>
    %149 = vector.broadcast %148 : vector<1x1x256xf32> to vector<1x2x256xf32>
    %150 = arith.subf %141, %149 : vector<1x2x256xf32>
    %151 = vector.broadcast %148 : vector<1x1x256xf32> to vector<1x2x256xf32>
    %152 = arith.subf %68, %151 : vector<1x2x256xf32>
    %153 = arith.mulf %150, %150 : vector<1x2x256xf32>
    %cst_56 = arith.constant dense<0.000000e+00> : vector<1x256xf32>
    %154 = vector.multi_reduction <add>, %153, %cst_56 [1] : vector<1x2x256xf32> to vector<1x256xf32>
    %155 = vector.shape_cast %154 : vector<1x256xf32> to vector<1x1x256xf32>
    %156 = arith.mulf %152, %152 : vector<1x2x256xf32>
    %cst_57 = arith.constant dense<0.000000e+00> : vector<1x256xf32>
    %157 = vector.multi_reduction <add>, %156, %cst_57 [1] : vector<1x2x256xf32> to vector<1x256xf32>
    %158 = vector.shape_cast %157 : vector<1x256xf32> to vector<1x1x256xf32>
    %159 = arith.addf %155, %158 : vector<1x1x256xf32>
    %cst_58 = arith.constant 2.500000e-01 : f32
    %160 = vector.broadcast %cst_58 : f32 to vector<1x1x256xf32>
    %161 = arith.mulf %159, %160 : vector<1x1x256xf32>
    %cst_59 = arith.constant 9.99999997E-7 : f32
    %162 = vector.broadcast %cst_59 : f32 to vector<1x1x256xf32>
    %163 = arith.addf %161, %162 : vector<1x1x256xf32>
    %164 = math.rsqrt %163 : vector<1x1x256xf32>
    %165 = vector.extract_strided_slice %1 {offsets = [0, 2], sizes = [2, 1], strides = [1, 1]} : vector<4x15xf32> to vector<2x1xf32>
    %166 = vector.shape_cast %165 : vector<2x1xf32> to vector<1x2x1xf32>
    %167 = vector.broadcast %164 : vector<1x1x256xf32> to vector<1x2x256xf32>
    %168 = arith.mulf %150, %167 : vector<1x2x256xf32>
    %169 = vector.broadcast %166 : vector<1x2x1xf32> to vector<1x2x256xf32>
    %170 = arith.mulf %169, %168 : vector<1x2x256xf32>
    %171 = vector.extract_strided_slice %1 {offsets = [0, 4], sizes = [2, 1], strides = [1, 1]} : vector<4x15xf32> to vector<2x1xf32>
    %172 = vector.shape_cast %171 : vector<2x1xf32> to vector<1x2x1xf32>
    %173 = vector.broadcast %172 : vector<1x2x1xf32> to vector<1x2x256xf32>
    %174 = arith.addf %170, %173 : vector<1x2x256xf32>
    %c0_60 = arith.constant 0 : index
    %c0_61 = arith.constant 0 : index
    %c0_62 = arith.constant 0 : index
    %c0_63 = arith.constant 0 : index
    %175 = vector.load %arg13[%c0_60, %c0_61, %c0_62, %c0_63] : memref<1x2x2x256xf32, #tpu.memory_space<vmem>>, vector<1x1x2x256xf32>
    %176 = vector.shape_cast %175 : vector<1x1x2x256xf32> to vector<1x2x256xf32>
    %177 = vector.shape_cast %174 : vector<1x2x256xf32> to vector<1x1x2x256xf32>
    tpu.vector_store %arg13[%c0_60, %c0_61, %c0_62, %c0_63], %177 {strides = array<i32>} : memref<1x2x2x256xf32, #tpu.memory_space<vmem>>, vector<1x1x2x256xf32>,
    %178 = vector.extract_strided_slice %1 {offsets = [0, 3], sizes = [2, 1], strides = [1, 1]} : vector<4x15xf32> to vector<2x1xf32>
    %179 = vector.shape_cast %178 : vector<2x1xf32> to vector<1x2x1xf32>
    %180 = vector.broadcast %164 : vector<1x1x256xf32> to vector<1x2x256xf32>
    %181 = arith.mulf %152, %180 : vector<1x2x256xf32>
    %182 = vector.broadcast %179 : vector<1x2x1xf32> to vector<1x2x256xf32>
    %183 = arith.mulf %182, %181 : vector<1x2x256xf32>
    %184 = vector.extract_strided_slice %1 {offsets = [0, 5], sizes = [2, 1], strides = [1, 1]} : vector<4x15xf32> to vector<2x1xf32>
    %185 = vector.shape_cast %184 : vector<2x1xf32> to vector<1x2x1xf32>
    %186 = vector.broadcast %185 : vector<1x2x1xf32> to vector<1x2x256xf32>
    %187 = arith.addf %183, %186 : vector<1x2x256xf32>
    %c0_64 = arith.constant 0 : index
    %c1_65 = arith.constant 1 : index
    %c0_66 = arith.constant 0 : index
    %c0_67 = arith.constant 0 : index
    %188 = vector.load %arg13[%c0_64, %c1_65, %c0_66, %c0_67] : memref<1x2x2x256xf32, #tpu.memory_space<vmem>>, vector<1x1x2x256xf32>
    %189 = vector.shape_cast %188 : vector<1x1x2x256xf32> to vector<1x2x256xf32>
    %190 = vector.shape_cast %187 : vector<1x2x256xf32> to vector<1x1x2x256xf32>
    tpu.vector_store %arg13[%c0_64, %c1_65, %c0_66, %c0_67], %190 {strides = array<i32>} : memref<1x2x2x256xf32, #tpu.memory_space<vmem>>, vector<1x1x2x256xf32>,
    return
  }
  func.func @transform_0(%arg0: i32) -> (i32, i32, i32) {
    %c0_i32 = arith.constant 0 : i32
    %c0_i32_0 = arith.constant 0 : i32
    %c0_i32_1 = arith.constant 0 : i32
    return %arg0, %c0_i32, %c0_i32_0 : i32, i32, i32
  }
  func.func @transform_1(%arg0: i32) -> (i32, i32) {
    %c0_i32 = arith.constant 0 : i32
    %c0_i32_0 = arith.constant 0 : i32
    %c0_i32_1 = arith.constant 0 : i32
    return %c0_i32, %c0_i32_0 : i32, i32
  }
  func.func @transform_2(%arg0: i32) -> (i32, i32) {
    %c0_i32 = arith.constant 0 : i32
    %c0_i32_0 = arith.constant 0 : i32
    %c0_i32_1 = arith.constant 0 : i32
    return %c0_i32, %c0_i32_0 : i32, i32
  }
  func.func @transform_3(%arg0: i32) -> (i32, i32, i32) {
    %c0_i32 = arith.constant 0 : i32
    %c0_i32_0 = arith.constant 0 : i32
    %c0_i32_1 = arith.constant 0 : i32
    %c0_i32_2 = arith.constant 0 : i32
    return %c0_i32, %c0_i32_0, %c0_i32_1 : i32, i32, i32
  }
  func.func @transform_4(%arg0: i32) -> (i32, i32) {
    %c0_i32 = arith.constant 0 : i32
    %c0_i32_0 = arith.constant 0 : i32
    %c0_i32_1 = arith.constant 0 : i32
    return %c0_i32, %c0_i32_0 : i32, i32
  }
  func.func @transform_5(%arg0: i32) -> (i32, i32) {
    %c0_i32 = arith.constant 0 : i32
    %c0_i32_0 = arith.constant 0 : i32
    %c0_i32_1 = arith.constant 0 : i32
    return %c0_i32, %c0_i32_0 : i32, i32
  }
  func.func @transform_6(%arg0: i32) -> (i32, i32) {
    %c0_i32 = arith.constant 0 : i32
    %c0_i32_0 = arith.constant 0 : i32
    %c0_i32_1 = arith.constant 0 : i32
    return %c0_i32, %c0_i32_0 : i32, i32
  }
  func.func @transform_7(%arg0: i32) -> (i32, i32) {
    %c0_i32 = arith.constant 0 : i32
    %c0_i32_0 = arith.constant 0 : i32
    %c0_i32_1 = arith.constant 0 : i32
    return %c0_i32, %c0_i32_0 : i32, i32
  }
  func.func @transform_8(%arg0: i32) -> (i32, i32) {
    %c0_i32 = arith.constant 0 : i32
    %c0_i32_0 = arith.constant 0 : i32
    %c0_i32_1 = arith.constant 0 : i32
    return %c0_i32, %c0_i32_0 : i32, i32
  }
  func.func @transform_9(%arg0: i32) -> (i32, i32) {
    %c0_i32 = arith.constant 0 : i32
    %c0_i32_0 = arith.constant 0 : i32
    %c0_i32_1 = arith.constant 0 : i32
    return %c0_i32, %c0_i32_0 : i32, i32
  }
  func.func @transform_10(%arg0: i32) -> (i32, i32) {
    %c0_i32 = arith.constant 0 : i32
    %c0_i32_0 = arith.constant 0 : i32
    %c0_i32_1 = arith.constant 0 : i32
    return %c0_i32, %c0_i32_0 : i32, i32
  }
  func.func @transform_11(%arg0: i32) -> (i32, i32) {
    %c0_i32 = arith.constant 0 : i32
    %c0_i32_0 = arith.constant 0 : i32
    %c0_i32_1 = arith.constant 0 : i32
    return %c0_i32, %c0_i32_0 : i32, i32
  }
  func.func @transform_12(%arg0: i32) -> (i32, i32, i32, i32) {
    %c0_i32 = arith.constant 0 : i32
    %c0_i32_0 = arith.constant 0 : i32
    %c0_i32_1 = arith.constant 0 : i32
    %c0_i32_2 = arith.constant 0 : i32
    return %arg0, %c0_i32, %c0_i32_0, %c0_i32_1 : i32, i32, i32, i32
  }
}

</mosaic_0001>

<llo_original>
// kernel: tpu_custom_call.1
$region0: #{tpu_custom_call.1}
  #allocation0 [shape = 'u32[]', space=smem, size = 0x4, offset = 0x4, fixed_abs, tag = 'smem constant byte address 0x4 - core index']
  #allocation1 [shape = 'u32[144,128]{1,0:T(1,128)}', space=vmem, size = 0x12000, scoped, tag = 'internal scratch']
  %s0 = inlined_call_operand.vmem [shape: f32[2,4,256], index: 0, kind: input, shape index: {}]
  %s1 = inlined_call_operand.vmem [shape: f32[4,15], index: 1, kind: input, shape index: {}]
  %s2 = inlined_call_operand.vmem [shape: f32[2,256], index: 2, kind: input, shape index: {}]
  %s3 = inlined_call_operand.vmem [shape: f32[2,2,144], index: 3, kind: input, shape index: {}]
  %s4 = inlined_call_operand.vmem [shape: f32[256,144], index: 4, kind: input, shape index: {}]
  %s5 = inlined_call_operand.vmem [shape: f32[256,144], index: 5, kind: input, shape index: {}]
  %s6 = inlined_call_operand.vmem [shape: f32[144,144], index: 6, kind: input, shape index: {}]
  %s7 = inlined_call_operand.vmem [shape: f32[144,144], index: 7, kind: input, shape index: {}]
  %s8 = inlined_call_operand.vmem [shape: f32[144,144], index: 8, kind: input, shape index: {}]
  %s9 = inlined_call_operand.vmem [shape: f32[144,144], index: 9, kind: input, shape index: {}]
  %s10 = inlined_call_operand.hbm [shape: f32[144,256], index: 10, kind: input, shape index: {}]
  %s11 = inlined_call_operand.hbm [shape: f32[144,256], index: 11, kind: input, shape index: {}]
  %s12 = inlined_call_operand.hbm [shape: f32[2,2,2,256], index: 12, kind: output, shape index: {}]
  %s13 = sld [smem:[#allocation0]]
  $region89: #{tpu_custom_call.1} parent=0
    _
  %s15 = ssub.s32 1, %s13
  %s16 = scalar_select 0, %s15, %s13
  $region1: #{tpu_custom_call.1} parent=0
    #allocation2 [shape = 'u8[147456]{0}', space=vmem, size = 0x24000, scoped, tag = 'input window, operand 10, single buffered']
    #allocation3 [shape = 's32[2]{0}', space=sflag, size = 0x8, scoped, tag = 'scoped memory for tpu_custom_call.1']
    #allocation4 [shape = 's32[2]{0}', space=sflag, size = 0x8, scoped, tag = 'scoped memory for tpu_custom_call.1']
    #allocation5 [shape = 'u8[147456]{0}', space=vmem, size = 0x24000, scoped, tag = 'input window, operand 11, single buffered']
    #allocation6 [shape = 's32[1]{0}', space=sflag, size = 0x4, scoped, tag = 'scoped memory for tpu_custom_call.1']
    #allocation7 [shape = 'u8[8192]{0}', space=vmem, size = 0x2000, scoped, tag = 'output window, operand 0']
    %17 = vsyncpa [#allocation3], 0
    %18 = vsyncpa [#allocation6], 0
    %19 = vsyncpa [#allocation4], 0
    %s20 = scalar_lea.sflag [#allocation4], 1
    %21 = vsyncpa %s20, 0
    loop: start=0, step=1, limit=4
    $region2: #{tpu_custom_call.1} parent=1 // loop_pre_header
      _
    $region3: #{tpu_custom_call.1} parent=1 // loop_header
      %s23 = sphi 0, %s27
      %p24 = scmp.ge.s32.totalorder %s23, 4
      %s33 = sphi 0, %s35
      %s36 = sphi 0, %s33
      %s37 = sphi 0, %s36
      %s53 = sphi 0, %s37
      %s57 = sphi 0, %s57
      %s59 = sphi 0, %s57
      %s60 = sphi 0, %s59
      %s74 = sphi 0, %s60
      %s78 = sphi 0, %s78
      %s80 = sphi 0, %s78
      %s81 = sphi 0, %s80
      %s95 = sphi 0, %s81
      %s99 = sphi 0, %s99
      %s101 = sphi 0, %s99
      %s102 = sphi 0, %s101
      %s116 = sphi 0, %s102
      %s120 = sphi 0, %s120
      %s122 = sphi 0, %s120
      %s123 = sphi 0, %s122
      %s137 = sphi 0, %s123
      %s141 = sphi 0, %s141
      %s143 = sphi 0, %s141
      %s144 = sphi 0, %s143
      %s158 = sphi 0, %s144
      %s162 = sphi 0, %s162
      %s164 = sphi 0, %s162
      %s165 = sphi 0, %s164
      %s179 = sphi 0, %s165
      %s183 = sphi 0, %s183
      %s185 = sphi 0, %s183
      %s186 = sphi 0, %s185
      %s200 = sphi 0, %s186
      %s204 = sphi 0, %s204
      %s206 = sphi 0, %s204
      %s207 = sphi 0, %s206
      %s221 = sphi 0, %s207
      %s225 = sphi 0, %s225
      %s227 = sphi 0, %s225
      %s228 = sphi 0, %s227
      %s242 = sphi 0, %s228
      %s246 = sphi 0, %s246
      %s248 = sphi 0, %s246
      %s249 = sphi 0, %s248
      %s263 = sphi 0, %s249
      %s267 = sphi 0, %s267
      %s269 = sphi 0, %s267
      %s270 = sphi 0, %s269
      %s284 = sphi 0, %s270
      %s290 = sphi 0, %s292
      %s293 = sphi 0, %s290
      %s294 = sphi 0, %s293
      %s310 = sphi 0, %s294
    $region4: #{tpu_custom_call.1} parent=1 // loop_header_branch
      %26 = sbr.rel (%p24) target = $region8
    $region5: #{tpu_custom_call.1} parent=1 // loop_body
      %s28 = ssub.s32 %s23, 1
      %s29 = ssub.s32 %s23, 2
      %s30 = sadd.s32 %s23, 1
      %s31 = ssub.s32 %s23, %s30
      %p32 = scmp.eq.s32.totalorder %s31, 0
      %s34 = sadd.s32 %s33, 1
      %s35 = scalar_select %p32, %s33, %s34
      %p38 = pneg %p32
      %p39 = scmp.eq.s32.totalorder %s23, 1
      %p40 = por %p38, %p39
      %p41 = scmp.ne.s32.totalorder %s33, %s36
      %p42 = scmp.eq.s32.totalorder %s23, 0
      %p43 = por %p41, %p42
      %p44 = scmp.ne.s32.totalorder %s33, %s36
      %p45 = scmp.eq.s32.totalorder %s28, 1
      %p46 = por %p44, %p45
      %p47 = scmp.ne.s32.totalorder %s36, %s37
      %p48 = scmp.eq.s32.totalorder %s28, 0
      %p49 = por %p47, %p48
      %p50 = scmp.ne.s32.totalorder %s36, %s37
      %p51 = scmp.eq.s32.totalorder %s29, 1
      %p52 = por %p50, %p51
      %p54 = scmp.ne.s32.totalorder %s37, %s53
      %p55 = scmp.eq.s32.totalorder %s29, 0
      %p56 = por %p54, %p55
      %s58 = sadd.s32 %s57, 1
      %p61 = scmp.eq.s32.totalorder %s23, 1
      %p62 = scmp.ne.s32.totalorder %s57, %s59
      %p63 = scmp.eq.s32.totalorder %s23, 0
      %p64 = por %p62, %p63
      %p65 = scmp.ne.s32.totalorder %s57, %s59
      %p66 = scmp.eq.s32.totalorder %s28, 1
      %p67 = por %p65, %p66
      %p68 = scmp.ne.s32.totalorder %s59, %s60
      %p69 = scmp.eq.s32.totalorder %s28, 0
      %p70 = por %p68, %p69
      %p71 = scmp.ne.s32.totalorder %s59, %s60
      %p72 = scmp.eq.s32.totalorder %s29, 1
      %p73 = por %p71, %p72
      %p75 = scmp.ne.s32.totalorder %s60, %s74
      %p76 = scmp.eq.s32.totalorder %s29, 0
      %p77 = por %p75, %p76
      %s79 = sadd.s32 %s78, 1
      %p82 = scmp.eq.s32.totalorder %s23, 1
      %p83 = scmp.ne.s32.totalorder %s78, %s80
      %p84 = scmp.eq.s32.totalorder %s23, 0
      %p85 = por %p83, %p84
      %p86 = scmp.ne.s32.totalorder %s78, %s80
      %p87 = scmp.eq.s32.totalorder %s28, 1
      %p88 = por %p86, %p87
      %p89 = scmp.ne.s32.totalorder %s80, %s81
      %p90 = scmp.eq.s32.totalorder %s28, 0
      %p91 = por %p89, %p90
      %p92 = scmp.ne.s32.totalorder %s80, %s81
      %p93 = scmp.eq.s32.totalorder %s29, 1
      %p94 = por %p92, %p93
      %p96 = scmp.ne.s32.totalorder %s81, %s95
      %p97 = scmp.eq.s32.totalorder %s29, 0
      %p98 = por %p96, %p97
      %s100 = sadd.s32 %s99, 1
      %p103 = scmp.eq.s32.totalorder %s23, 1
      %p104 = scmp.ne.s32.totalorder %s99, %s101
      %p105 = scmp.eq.s32.totalorder %s23, 0
      %p106 = por %p104, %p105
      %p107 = scmp.ne.s32.totalorder %s99, %s101
      %p108 = scmp.eq.s32.totalorder %s28, 1
      %p109 = por %p107, %p108
      %p110 = scmp.ne.s32.totalorder %s101, %s102
      %p111 = scmp.eq.s32.totalorder %s28, 0
      %p112 = por %p110, %p111
      %p113 = scmp.ne.s32.totalorder %s101, %s102
      %p114 = scmp.eq.s32.totalorder %s29, 1
      %p115 = por %p113, %p114
      %p117 = scmp.ne.s32.totalorder %s102, %s116
      %p118 = scmp.eq.s32.totalorder %s29, 0
      %p119 = por %p117, %p118
      %s121 = sadd.s32 %s120, 1
      %p124 = scmp.eq.s32.totalorder %s23, 1
      %p125 = scmp.ne.s32.totalorder %s120, %s122
      %p126 = scmp.eq.s32.totalorder %s23, 0
      %p127 = por %p125, %p126
      %p128 = scmp.ne.s32.totalorder %s120, %s122
      %p129 = scmp.eq.s32.totalorder %s28, 1
      %p130 = por %p128, %p129
      %p131 = scmp.ne.s32.totalorder %s122, %s123
      %p132 = scmp.eq.s32.totalorder %s28, 0
      %p133 = por %p131, %p132
      %p134 = scmp.ne.s32.totalorder %s122, %s123
      %p135 = scmp.eq.s32.totalorder %s29, 1
      %p136 = por %p134, %p135
      %p138 = scmp.ne.s32.totalorder %s123, %s137
      %p139 = scmp.eq.s32.totalorder %s29, 0
      %p140 = por %p138, %p139
      %s142 = sadd.s32 %s141, 1
      %p145 = scmp.eq.s32.totalorder %s23, 1
      %p146 = scmp.ne.s32.totalorder %s141, %s143
      %p147 = scmp.eq.s32.totalorder %s23, 0
      %p148 = por %p146, %p147
      %p149 = scmp.ne.s32.totalorder %s141, %s143
      %p150 = scmp.eq.s32.totalorder %s28, 1
      %p151 = por %p149, %p150
      %p152 = scmp.ne.s32.totalorder %s143, %s144
      %p153 = scmp.eq.s32.totalorder %s28, 0
      %p154 = por %p152, %p153
      %p155 = scmp.ne.s32.totalorder %s143, %s144
      %p156 = scmp.eq.s32.totalorder %s29, 1
      %p157 = por %p155, %p156
      %p159 = scmp.ne.s32.totalorder %s144, %s158
      %p160 = scmp.eq.s32.totalorder %s29, 0
      %p161 = por %p159, %p160
      %s163 = sadd.s32 %s162, 1
      %p166 = scmp.eq.s32.totalorder %s23, 1
      %p167 = scmp.ne.s32.totalorder %s162, %s164
      %p168 = scmp.eq.s32.totalorder %s23, 0
      %p169 = por %p167, %p168
      %p170 = scmp.ne.s32.totalorder %s162, %s164
      %p171 = scmp.eq.s32.totalorder %s28, 1
      %p172 = por %p170, %p171
      %p173 = scmp.ne.s32.totalorder %s164, %s165
      %p174 = scmp.eq.s32.totalorder %s28, 0
      %p175 = por %p173, %p174
      %p176 = scmp.ne.s32.totalorder %s164, %s165
      %p177 = scmp.eq.s32.totalorder %s29, 1
      %p178 = por %p176, %p177
      %p180 = scmp.ne.s32.totalorder %s165, %s179
      %p181 = scmp.eq.s32.totalorder %s29, 0
      %p182 = por %p180, %p181
      %s184 = sadd.s32 %s183, 1
      %p187 = scmp.eq.s32.totalorder %s23, 1
      %p188 = scmp.ne.s32.totalorder %s183, %s185
      %p189 = scmp.eq.s32.totalorder %s23, 0
      %p190 = por %p188, %p189
      %p191 = scmp.ne.s32.totalorder %s183, %s185
      %p192 = scmp.eq.s32.totalorder %s28, 1
      %p193 = por %p191, %p192
      %p194 = scmp.ne.s32.totalorder %s185, %s186
      %p195 = scmp.eq.s32.totalorder %s28, 0
      %p196 = por %p194, %p195
      %p197 = scmp.ne.s32.totalorder %s185, %s186
      %p198 = scmp.eq.s32.totalorder %s29, 1
      %p199 = por %p197, %p198
      %p201 = scmp.ne.s32.totalorder %s186, %s200
      %p202 = scmp.eq.s32.totalorder %s29, 0
      %p203 = por %p201, %p202
      %s205 = sadd.s32 %s204, 1
      %p208 = scmp.eq.s32.totalorder %s23, 1
      %p209 = scmp.ne.s32.totalorder %s204, %s206
      %p210 = scmp.eq.s32.totalorder %s23, 0
      %p211 = por %p209, %p210
      %p212 = scmp.ne.s32.totalorder %s204, %s206
      %p213 = scmp.eq.s32.totalorder %s28, 1
      %p214 = por %p212, %p213
      %p215 = scmp.ne.s32.totalorder %s206, %s207
      %p216 = scmp.eq.s32.totalorder %s28, 0
      %p217 = por %p215, %p216
      %p218 = scmp.ne.s32.totalorder %s206, %s207
      %p219 = scmp.eq.s32.totalorder %s29, 1
      %p220 = por %p218, %p219
      %p222 = scmp.ne.s32.totalorder %s207, %s221
      %p223 = scmp.eq.s32.totalorder %s29, 0
      %p224 = por %p222, %p223
      %s226 = sadd.s32 %s225, 1
      %p229 = scmp.eq.s32.totalorder %s23, 1
      %p230 = scmp.ne.s32.totalorder %s225, %s227
      %p231 = scmp.eq.s32.totalorder %s23, 0
      %p232 = por %p230, %p231
      %p233 = scmp.ne.s32.totalorder %s225, %s227
      %p234 = scmp.eq.s32.totalorder %s28, 1
      %p235 = por %p233, %p234
      %p236 = scmp.ne.s32.totalorder %s227, %s228
      %p237 = scmp.eq.s32.totalorder %s28, 0
      %p238 = por %p236, %p237
      %p239 = scmp.ne.s32.totalorder %s227, %s228
      %p240 = scmp.eq.s32.totalorder %s29, 1
      %p241 = por %p239, %p240
      %p243 = scmp.ne.s32.totalorder %s228, %s242
      %p244 = scmp.eq.s32.totalorder %s29, 0
      %p245 = por %p243, %p244
      %s247 = sadd.s32 %s246, 1
      %p250 = scmp.eq.s32.totalorder %s23, 1
      %p251 = scmp.ne.s32.totalorder %s246, %s248
      %p252 = scmp.eq.s32.totalorder %s23, 0
      %p253 = por %p251, %p252
      %p254 = scmp.ne.s32.totalorder %s246, %s248
      %p255 = scmp.eq.s32.totalorder %s28, 1
      %p256 = por %p254, %p255
      %p257 = scmp.ne.s32.totalorder %s248, %s249
      %p258 = scmp.eq.s32.totalorder %s28, 0
      %p259 = por %p257, %p258
      %p260 = scmp.ne.s32.totalorder %s248, %s249
      %p261 = scmp.eq.s32.totalorder %s29, 1
      %p262 = por %p260, %p261
      %p264 = scmp.ne.s32.totalorder %s249, %s263
      %p265 = scmp.eq.s32.totalorder %s29, 0
      %p266 = por %p264, %p265
      %s268 = sadd.s32 %s267, 1
      %p271 = scmp.eq.s32.totalorder %s23, 1
      %p272 = scmp.ne.s32.totalorder %s267, %s269
      %p273 = scmp.eq.s32.totalorder %s23, 0
      %p274 = por %p272, %p273
      %p275 = scmp.ne.s32.totalorder %s267, %s269
      %p276 = scmp.eq.s32.totalorder %s28, 1
      %p277 = por %p275, %p276
      %p278 = scmp.ne.s32.totalorder %s269, %s270
      %p279 = scmp.eq.s32.totalorder %s28, 0
      %p280 = por %p278, %p279
      %p281 = scmp.ne.s32.totalorder %s269, %s270
      %p282 = scmp.eq.s32.totalorder %s29, 1
      %p283 = por %p281, %p282
      %p285 = scmp.ne.s32.totalorder %s270, %s284
      %p286 = scmp.eq.s32.totalorder %s29, 0
      %p287 = por %p285, %p286
      %s288 = ssub.s32 %s23, %s30
      %p289 = scmp.eq.s32.totalorder %s288, 0
      %s291 = sadd.s32 %s290, 1
      %s292 = scalar_select %p289, %s290, %s291
      %p295 = pneg %p289
      %p296 = scmp.eq.s32.totalorder %s23, 1
      %p297 = por %p295, %p296
      %p298 = scmp.ne.s32.totalorder %s290, %s293
      %p299 = scmp.eq.s32.totalorder %s23, 0
      %p300 = por %p298, %p299
      %p301 = scmp.ne.s32.totalorder %s290, %s293
      %p302 = scmp.eq.s32.totalorder %s28, 1
      %p303 = por %p301, %p302
      %p304 = scmp.ne.s32.totalorder %s293, %s294
      %p305 = scmp.eq.s32.totalorder %s28, 0
      %p306 = por %p304, %p305
      %p307 = scmp.ne.s32.totalorder %s293, %s294
      %p308 = scmp.eq.s32.totalorder %s29, 1
      %p309 = por %p307, %p308
      %p311 = scmp.ne.s32.totalorder %s294, %s310
      %p312 = scmp.eq.s32.totalorder %s29, 0
      %p313 = por %p311, %p312
      %p314 = scmp.le.s32.totalorder 1, %s23
      %p315 = scmp.lt.s32.totalorder %s23, 3
      %p316 = pnand %p314, %p315
      %p317 = pneg %p316
      // Predicated region
      $region9: #{tpu_custom_call.1} parent=5 // pred_check
        _
      $region10: #{tpu_custom_call.1} parent=5 // pred_check_branch
        %319 = sbr.rel (%p316) target = $region12
      $region11: #{tpu_custom_call.1} parent=5 // pred_region
        %s320 = ssub.s32 %s23, 1
        // Predicated region
        $region13: #{tpu_custom_call.1} parent=11 // pred_check
          %p321 = pneg %p70
        $region14: #{tpu_custom_call.1} parent=11 // pred_check_branch
          %323 = sbr.rel (%p321) target = $region16
        $region15: #{tpu_custom_call.1} parent=11 // pred_region
          _
        $region16: #{tpu_custom_call.1} parent=11 // pred_fallthru
          _
        // Predicated region
        $region17: #{tpu_custom_call.1} parent=11 // pred_check
          %p324 = pneg %p91
        $region18: #{tpu_custom_call.1} parent=11 // pred_check_branch
          %326 = sbr.rel (%p324) target = $region20
        $region19: #{tpu_custom_call.1} parent=11 // pred_region
          _
        $region20: #{tpu_custom_call.1} parent=11 // pred_fallthru
          _
        // Predicated region
        $region21: #{tpu_custom_call.1} parent=11 // pred_check
          %p327 = pneg %p112
        $region22: #{tpu_custom_call.1} parent=11 // pred_check_branch
          %329 = sbr.rel (%p327) target = $region24
        $region23: #{tpu_custom_call.1} parent=11 // pred_region
          _
        $region24: #{tpu_custom_call.1} parent=11 // pred_fallthru
          _
        // Predicated region
        $region25: #{tpu_custom_call.1} parent=11 // pred_check
          %p330 = pneg %p133
        $region26: #{tpu_custom_call.1} parent=11 // pred_check_branch
          %332 = sbr.rel (%p330) target = $region28
        $region27: #{tpu_custom_call.1} parent=11 // pred_region
          _
        $region28: #{tpu_custom_call.1} parent=11 // pred_fallthru
          _
        // Predicated region
        $region29: #{tpu_custom_call.1} parent=11 // pred_check
          %p333 = pneg %p154
        $region30: #{tpu_custom_call.1} parent=11 // pred_check_branch
          %335 = sbr.rel (%p333) target = $region32
        $region31: #{tpu_custom_call.1} parent=11 // pred_region
          _
        $region32: #{tpu_custom_call.1} parent=11 // pred_fallthru
          _
        // Predicated region
        $region33: #{tpu_custom_call.1} parent=11 // pred_check
          %p336 = pneg %p175
        $region34: #{tpu_custom_call.1} parent=11 // pred_check_branch
          %338 = sbr.rel (%p336) target = $region36
        $region35: #{tpu_custom_call.1} parent=11 // pred_region
          _
        $region36: #{tpu_custom_call.1} parent=11 // pred_fallthru
          _
        // Predicated region
        $region37: #{tpu_custom_call.1} parent=11 // pred_check
          %p339 = pneg %p196
        $region38: #{tpu_custom_call.1} parent=11 // pred_check_branch
          %341 = sbr.rel (%p339) target = $region40
        $region39: #{tpu_custom_call.1} parent=11 // pred_region
          _
        $region40: #{tpu_custom_call.1} parent=11 // pred_fallthru
          _
        // Predicated region
        $region41: #{tpu_custom_call.1} parent=11 // pred_check
          %p342 = pneg %p217
        $region42: #{tpu_custom_call.1} parent=11 // pred_check_branch
          %344 = sbr.rel (%p342) target = $region44
        $region43: #{tpu_custom_call.1} parent=11 // pred_region
          _
        $region44: #{tpu_custom_call.1} parent=11 // pred_fallthru
          _
        // Predicated region
        $region45: #{tpu_custom_call.1} parent=11 // pred_check
          %p345 = pneg %p238
        $region46: #{tpu_custom_call.1} parent=11 // pred_check_branch
          %347 = sbr.rel (%p345) target = $region48
        $region47: #{tpu_custom_call.1} parent=11 // pred_region
          _
        $region48: #{tpu_custom_call.1} parent=11 // pred_fallthru
          _
        // Predicated region
        $region49: #{tpu_custom_call.1} parent=11 // pred_check
          %p348 = pneg %p259
        $region50: #{tpu_custom_call.1} parent=11 // pred_check_branch
          %350 = sbr.rel (%p348) target = $region52
        $region51: #{tpu_custom_call.1} parent=11 // pred_region
          %s352 = ssub.s32 4608, 4608
          %353 = vsyncadd [#allocation3], %s352
          %s354 = sshll.u32 [#allocation2], 4
          %s355 = int_to_ptr.vmem [resolvable:$true] %s354
          %360 = dma.hbm_to_vmem [thread:$0]  %s10, 4608, %s355, [#allocation3], 256, 256, 16
        $region52: #{tpu_custom_call.1} parent=11 // pred_fallthru
          _
        // Predicated region
        $region53: #{tpu_custom_call.1} parent=11 // pred_check
          %p361 = pneg %p280
        $region54: #{tpu_custom_call.1} parent=11 // pred_check_branch
          %363 = sbr.rel (%p361) target = $region56
        $region55: #{tpu_custom_call.1} parent=11 // pred_region
          %s365 = ssub.s32 4608, 4608
          %366 = vsyncadd [#allocation6], %s365
          %s367 = sshll.u32 [#allocation5], 4
          %s368 = int_to_ptr.vmem [resolvable:$true] %s367
          %373 = dma.hbm_to_vmem [thread:$0]  %s11, 4608, %s368, [#allocation6], 256, 256, 16
        $region56: #{tpu_custom_call.1} parent=11 // pred_fallthru
          _
      $region12: #{tpu_custom_call.1} parent=5 // pred_fallthru
        _
      %p374 = scmp.lt.s32.totalorder %s23, 2
      // Predicated region
      $region57: #{tpu_custom_call.1} parent=5 // pred_check
        %p375 = pneg %p374
      $region58: #{tpu_custom_call.1} parent=5 // pred_check_branch
        %377 = sbr.rel (%p375) target = $region60
      $region59: #{tpu_custom_call.1} parent=5 // pred_region
        // Predicated region
        $region61: #{tpu_custom_call.1} parent=59 // pred_check
          %p378 = pneg %p43
        $region62: #{tpu_custom_call.1} parent=59 // pred_check_branch
          %380 = sbr.rel (%p378) target = $region64
        $region63: #{tpu_custom_call.1} parent=59 // pred_region
          %p381 = scmp.lt.s32.totalorder %s23, 1
          %s382 = scalar_select %p381, %s23, 1
          %s383 = smul.addr %s382, 2
          %s384 = smul.addr %s383, 4
          %s385 = scalar_lea.vmem %s0, %s384
        $region64: #{tpu_custom_call.1} parent=59 // pred_fallthru
          _
      $region60: #{tpu_custom_call.1} parent=5 // pred_fallthru
        _
      %p386 = scmp.le.s32.totalorder 1, %s23
      %p387 = scmp.lt.s32.totalorder %s23, 3
      %p388 = pnand %p386, %p387
      %p389 = pneg %p388
      // Predicated region
      $region65: #{tpu_custom_call.1} parent=5 // pred_check
        _
      $region66: #{tpu_custom_call.1} parent=5 // pred_check_branch
        %391 = sbr.rel (%p388) target = $region68
      $region67: #{tpu_custom_call.1} parent=5 // pred_region
        %s392 = ssub.s32 %s23, 1
        // Predicated region
        $region69: #{tpu_custom_call.1} parent=67 // pred_check
          %p393 = pneg %p259
        $region70: #{tpu_custom_call.1} parent=67 // pred_check_branch
          %395 = sbr.rel (%p393) target = $region72
        $region71: #{tpu_custom_call.1} parent=67 // pred_region
          %396 = dma.done [#allocation3], 4608
        $region72: #{tpu_custom_call.1} parent=67 // pred_fallthru
          _
        // Predicated region
        $region73: #{tpu_custom_call.1} parent=67 // pred_check
          %p397 = pneg %p280
        $region74: #{tpu_custom_call.1} parent=67 // pred_check_branch
          %399 = sbr.rel (%p397) target = $region76
        $region75: #{tpu_custom_call.1} parent=67 // pred_region
          %400 = dma.done [#allocation6], 4608
        $region76: #{tpu_custom_call.1} parent=67 // pred_fallthru
          _
        %p401 = scmp.lt.s32.totalorder %s28, 1
        %s402 = scalar_select %p401, %s28, 1
        %s403 = smul.addr %s402, 2
        %s404 = smul.addr %s403, 4
        %s405 = scalar_lea.vmem %s0, %s404
        %p406 = pneg %p49
        %p407 = pneg %p46
        %p408 = pneg %p70
        %p409 = pneg %p67
        %p410 = pneg %p91
        %p411 = pneg %p88
        %p412 = pneg %p112
        %p413 = pneg %p109
        %p414 = pneg %p133
        %p415 = pneg %p130
        %p416 = pneg %p154
        %p417 = pneg %p151
        %p418 = pneg %p175
        %p419 = pneg %p172
        %p420 = pneg %p196
        %p421 = pneg %p193
        %p422 = pneg %p217
        %p423 = pneg %p214
        %p424 = pneg %p238
        %p425 = pneg %p235
        %p426 = pneg %p259
        %p427 = pneg %p256
        %p428 = pneg %p280
        %p429 = pneg %p277
        %p430 = pneg %p306
        %p431 = pneg %p303
        %s432 = sand.u32 %s293, 1
        %s433 = scalar_lea.sflag [#allocation4], %s432
        %s434 = sand.u32 %s293, 1
        %s435 = smul.addr %s434, 8
        %s436 = scalar_lea.vmem [#allocation7], %s435
        %p437 = scmp.lt.s32.totalorder %s28, 1
        %s438 = scalar_select %p437, %s28, 1
        %s439 = smul.addr %s438, 2
        %s440 = smul.addr %s439, 4
        %s441 = scalar_lea.vmem %s0, %s440
        %v442 = vld [vmem:[%s441] sm:$0xff]
        %v443 = vld [vmem:[%s1] sm:$0xf]
        %v445 = vcombine.high %v442, %v442
        %vm447 = vcmask 1043456
        %v448 = vsel %vm447, %v442, 0.0
        %v449 = vrot.slane %v448, 4
        %v450 = vadd.f32 %v448, %v449
        %v451 = vrot.slane %v450, 2
        %v452 = vadd.f32 %v450, %v451
        %v453 = vrot.slane %v452, 1
        %v454 = vadd.f32 %v452, %v453
        %v455 = vsel %vm447, %v445, 0.0
        %v456 = vrot.slane %v455, 4
        %v457 = vadd.f32 %v455, %v456
        %v458 = vrot.slane %v457, 2
        %v459 = vadd.f32 %v457, %v458
        %v460 = vrot.slane %v459, 1
        %v461 = vadd.f32 %v459, %v460
        %v462 = vrcp.pop 4.0
        %v463 = vmul.f32 %v454, %v462
        %v464 = vmul.f32 %v461, %v462
        %v467 = vcombine.low %v463, %v464
        %v469 = vsub.f32 %v442, %v467
        %v470 = vmul.f32 %v469, %v469
        %v472 = vcombine.high %v470, %v470
        %v474 = vsel %vm447, %v470, 0.0
        %v475 = vrot.slane %v474, 4
        %v476 = vadd.f32 %v474, %v475
        %v477 = vrot.slane %v476, 2
        %v478 = vadd.f32 %v476, %v477
        %v479 = vrot.slane %v478, 1
        %v480 = vadd.f32 %v478, %v479
        %v481 = vsel %vm447, %v472, 0.0
        %v482 = vrot.slane %v481, 4
        %v483 = vadd.f32 %v481, %v482
        %v484 = vrot.slane %v483, 2
        %v485 = vadd.f32 %v483, %v484
        %v486 = vrot.slane %v485, 1
        %v487 = vadd.f32 %v485, %v486
        %v488 = vmul.f32 %v480, %v462
        %v489 = vmul.f32 %v487, %v462
        %v490 = vadd.f32 %v488, 1e-06
        %v491 = vadd.f32 %v489, 1e-06
        %v492 = vrsqrt.pop %v490
        %v493 = vrsqrt.pop %v491
        %v496 = vcombine.low %v492, %v493
        %v498 = vmul.f32 %v469, %v496
        %500 = vset.pattern.permute.xlu0 0
        %501 = vperm.xlu0 %500, %v443
        %v502 = vpop.permute.xlu0 %501
        %v505 = vcombine.high %v498, %v498
        %v507 = vmul.f32 %v502, %v498
        %v508 = vmul.f32 %v502, %v505
        %509 = vset.pattern.permute.xlu0 1
        %510 = vperm.xlu0 %509, %v443
        %v511 = vpop.permute.xlu0 %510
        %v513 = vadd.f32 %v507, %v511
        %v514 = vadd.f32 %v508, %v511
        %v515 = vld [vmem:[%s4] sm:$0xff]
        %v516 = vld [vmem:[%s4 + $0x8] sm:$0xff]
        %v517 = vld [vmem:[%s4 + $0x10] sm:$0xff]
        %v518 = vld [vmem:[%s4 + $0x18] sm:$0xff]
        %v519 = vld [vmem:[%s4 + $0x20] sm:$0xff]
        %v520 = vld [vmem:[%s4 + $0x28] sm:$0xff]
        %v521 = vld [vmem:[%s4 + $0x30] sm:$0xff]
        %v522 = vld [vmem:[%s4 + $0x38] sm:$0xff]
        %v523 = vld [vmem:[%s4 + $0x40] sm:$0xff]
        %v524 = vld [vmem:[%s4 + $0x48] sm:$0xff]
        %v525 = vld [vmem:[%s4 + $0x50] sm:$0xff]
        %v526 = vld [vmem:[%s4 + $0x58] sm:$0xff]
        %v527 = vld [vmem:[%s4 + $0x60] sm:$0xff]
        %v528 = vld [vmem:[%s4 + $0x68] sm:$0xff]
        %v529 = vld [vmem:[%s4 + $0x70] sm:$0xff]
        %v530 = vld [vmem:[%s4 + $0x78] sm:$0xff]
        %v531 = vld [vmem:[%s4 + $0x80] sm:$0xff]
        %v532 = vld [vmem:[%s4 + $0x88] sm:$0xff]
        %v533 = vld [vmem:[%s4 + $0x90] sm:$0xff]
        %v534 = vld [vmem:[%s4 + $0x98] sm:$0xff]
        %v535 = vld [vmem:[%s4 + $0xa0] sm:$0xff]
        %v536 = vld [vmem:[%s4 + $0xa8] sm:$0xff]
        %v537 = vld [vmem:[%s4 + $0xb0] sm:$0xff]
        %v538 = vld [vmem:[%s4 + $0xb8] sm:$0xff]
        %v539 = vld [vmem:[%s4 + $0xc0] sm:$0xff]
        %v540 = vld [vmem:[%s4 + $0xc8] sm:$0xff]
        %v541 = vld [vmem:[%s4 + $0xd0] sm:$0xff]
        %v542 = vld [vmem:[%s4 + $0xd8] sm:$0xff]
        %v543 = vld [vmem:[%s4 + $0xe0] sm:$0xff]
        %v544 = vld [vmem:[%s4 + $0xe8] sm:$0xff]
        %v545 = vld [vmem:[%s4 + $0xf0] sm:$0xff]
        %v546 = vld [vmem:[%s4 + $0xf8] sm:$0xff]
        %v547 = vld [vmem:[%s4 + $0x100] sm:$0xff]
        %v548 = vld [vmem:[%s4 + $0x108] sm:$0xff]
        %v549 = vld [vmem:[%s4 + $0x110] sm:$0xff]
        %v550 = vld [vmem:[%s4 + $0x118] sm:$0xff]
        %v551 = vld [vmem:[%s4 + $0x120] sm:$0xff]
        %v552 = vld [vmem:[%s4 + $0x128] sm:$0xff]
        %v553 = vld [vmem:[%s4 + $0x130] sm:$0xff]
        %v554 = vld [vmem:[%s4 + $0x138] sm:$0xff]
        %v555 = vld [vmem:[%s4 + $0x140] sm:$0xff]
        %v556 = vld [vmem:[%s4 + $0x148] sm:$0xff]
        %v557 = vld [vmem:[%s4 + $0x150] sm:$0xff]
        %v558 = vld [vmem:[%s4 + $0x158] sm:$0xff]
        %v559 = vld [vmem:[%s4 + $0x160] sm:$0xff]
        %v560 = vld [vmem:[%s4 + $0x168] sm:$0xff]
        %v561 = vld [vmem:[%s4 + $0x170] sm:$0xff]
        %v562 = vld [vmem:[%s4 + $0x178] sm:$0xff]
        %v563 = vld [vmem:[%s4 + $0x180] sm:$0xff]
        %v564 = vld [vmem:[%s4 + $0x188] sm:$0xff]
        %v565 = vld [vmem:[%s4 + $0x190] sm:$0xff]
        %v566 = vld [vmem:[%s4 + $0x198] sm:$0xff]
        %v567 = vld [vmem:[%s4 + $0x1a0] sm:$0xff]
        %v568 = vld [vmem:[%s4 + $0x1a8] sm:$0xff]
        %v569 = vld [vmem:[%s4 + $0x1b0] sm:$0xff]
        %v570 = vld [vmem:[%s4 + $0x1b8] sm:$0xff]
        %v571 = vld [vmem:[%s4 + $0x1c0] sm:$0xff]
        %v572 = vld [vmem:[%s4 + $0x1c8] sm:$0xff]
        %v573 = vld [vmem:[%s4 + $0x1d0] sm:$0xff]
        %v574 = vld [vmem:[%s4 + $0x1d8] sm:$0xff]
        %v575 = vld [vmem:[%s4 + $0x1e0] sm:$0xff]
        %v576 = vld [vmem:[%s4 + $0x1e8] sm:$0xff]
        %v577 = vld [vmem:[%s4 + $0x1f0] sm:$0xff]
        %v578 = vld [vmem:[%s4 + $0x1f8] sm:$0xff]
        %v581 = vrot.slane %v513, 2
        %v582 = vrot.slane %v514, 2
        %585 = vmatprep.subr.mxu0 %v516
        %586 = vmatpush1.msra.mxu0 %v515
        %587 = vmatprep.subr.mxu0 %v518
        %588 = vmatpush1.msra.mxu0 %v517
        %589 = vmatprep.subr.mxu0 %v520
        %590 = vmatpush1.msra.mxu0 %v519
        %591 = vmatprep.subr.mxu0 %v522
        %592 = vmatpush1.msra.mxu0 %v521
        %593 = vmatprep.subr.mxu0 %v524
        %594 = vmatpush1.msra.mxu0 %v523
        %595 = vmatprep.subr.mxu0 %v526
        %596 = vmatpush1.msra.mxu0 %v525
        %597 = vmatprep.subr.mxu0 %v528
        %598 = vmatpush1.msra.mxu0 %v527
        %599 = vmatprep.subr.mxu0 %v530
        %600 = vmatpush1.msra.mxu0 %v529
        %601 = vmatprep.subr.mxu0 %v532
        %602 = vmatpush1.msra.mxu0 %v531
        %603 = vmatprep.subr.mxu0 %v534
        %604 = vmatpush1.msra.mxu0 %v533
        %605 = vmatprep.subr.mxu0 %v536
        %606 = vmatpush1.msra.mxu0 %v535
        %607 = vmatprep.subr.mxu0 %v538
        %608 = vmatpush1.msra.mxu0 %v537
        %609 = vmatprep.subr.mxu0 %v540
        %610 = vmatpush1.msra.mxu0 %v539
        %611 = vmatprep.subr.mxu0 %v542
        %612 = vmatpush1.msra.mxu0 %v541
        %613 = vmatprep.subr.mxu0 %v544
        %614 = vmatpush1.msra.mxu0 %v543
        %615 = vmatprep.subr.mxu0 %v546
        %616 = vmatpush1.msra.mxu0 %v545
        %617 = vmatprep.subr.mxu0 %v548
        %618 = vmatpush1.msra.mxu0 %v547
        %619 = vmatprep.subr.mxu0 %v550
        %620 = vmatpush1.msra.mxu0 %v549
        %621 = vmatprep.subr.mxu0 %v552
        %622 = vmatpush1.msra.mxu0 %v551
        %623 = vmatprep.subr.mxu0 %v554
        %624 = vmatpush1.msra.mxu0 %v553
        %625 = vmatprep.subr.mxu0 %v556
        %626 = vmatpush1.msra.mxu0 %v555
        %627 = vmatprep.subr.mxu0 %v558
        %628 = vmatpush1.msra.mxu0 %v557
        %629 = vmatprep.subr.mxu0 %v560
        %630 = vmatpush1.msra.mxu0 %v559
        %631 = vmatprep.subr.mxu0 %v562
        %632 = vmatpush1.msra.mxu0 %v561
        %633 = vmatprep.subr.mxu0 %v564
        %634 = vmatpush1.msra.mxu0 %v563
        %635 = vmatprep.subr.mxu0 %v566
        %636 = vmatpush1.msra.mxu0 %v565
        %637 = vmatprep.subr.mxu0 %v568
        %638 = vmatpush1.msra.mxu0 %v567
        %639 = vmatprep.subr.mxu0 %v570
        %640 = vmatpush1.msra.mxu0 %v569
        %641 = vmatprep.subr.mxu0 %v572
        %642 = vmatpush1.msra.mxu0 %v571
        %643 = vmatprep.subr.mxu0 %v574
        %644 = vmatpush1.msra.mxu0 %v573
        %645 = vmatprep.subr.mxu0 %v576
        %646 = vmatpush1.msra.mxu0 %v575
        %647 = vmatprep.subr.mxu0 %v578
        %648 = vmatpush1.msra.mxu0 %v577
        %649 = vmatprep.mubr.f32.mxu0 %v582
        %650 = vmatmul.mubr.f32.gmra.mrb[0].mxu0 %v581
        %v651 = vpop.f32.mrb[0].mxu0
        %v652 = vadd.f32 0.0, %v651
        %v653 = vpop.f32.mrb[0].mxu0
        %v654 = vadd.f32 0.0, %v653
        %655 = vdwg.mxu0
        %v656 = vld [vmem:[%s5] sm:$0xff]
        %v657 = vld [vmem:[%s5 + $0x8] sm:$0xff]
        %v658 = vld [vmem:[%s5 + $0x10] sm:$0xff]
        %v659 = vld [vmem:[%s5 + $0x18] sm:$0xff]
        %v660 = vld [vmem:[%s5 + $0x20] sm:$0xff]
        %v661 = vld [vmem:[%s5 + $0x28] sm:$0xff]
        %v662 = vld [vmem:[%s5 + $0x30] sm:$0xff]
        %v663 = vld [vmem:[%s5 + $0x38] sm:$0xff]
        %v664 = vld [vmem:[%s5 + $0x40] sm:$0xff]
        %v665 = vld [vmem:[%s5 + $0x48] sm:$0xff]
        %v666 = vld [vmem:[%s5 + $0x50] sm:$0xff]
        %v667 = vld [vmem:[%s5 + $0x58] sm:$0xff]
        %v668 = vld [vmem:[%s5 + $0x60] sm:$0xff]
        %v669 = vld [vmem:[%s5 + $0x68] sm:$0xff]
        %v670 = vld [vmem:[%s5 + $0x70] sm:$0xff]
        %v671 = vld [vmem:[%s5 + $0x78] sm:$0xff]
        %v672 = vld [vmem:[%s5 + $0x80] sm:$0xff]
        %v673 = vld [vmem:[%s5 + $0x88] sm:$0xff]
        %v674 = vld [vmem:[%s5 + $0x90] sm:$0xff]
        %v675 = vld [vmem:[%s5 + $0x98] sm:$0xff]
        %v676 = vld [vmem:[%s5 + $0xa0] sm:$0xff]
        %v677 = vld [vmem:[%s5 + $0xa8] sm:$0xff]
        %v678 = vld [vmem:[%s5 + $0xb0] sm:$0xff]
        %v679 = vld [vmem:[%s5 + $0xb8] sm:$0xff]
        %v680 = vld [vmem:[%s5 + $0xc0] sm:$0xff]
        %v681 = vld [vmem:[%s5 + $0xc8] sm:$0xff]
        %v682 = vld [vmem:[%s5 + $0xd0] sm:$0xff]
        %v683 = vld [vmem:[%s5 + $0xd8] sm:$0xff]
        %v684 = vld [vmem:[%s5 + $0xe0] sm:$0xff]
        %v685 = vld [vmem:[%s5 + $0xe8] sm:$0xff]
        %v686 = vld [vmem:[%s5 + $0xf0] sm:$0xff]
        %v687 = vld [vmem:[%s5 + $0xf8] sm:$0xff]
        %v688 = vld [vmem:[%s5 + $0x100] sm:$0xff]
        %v689 = vld [vmem:[%s5 + $0x108] sm:$0xff]
        %v690 = vld [vmem:[%s5 + $0x110] sm:$0xff]
        %v691 = vld [vmem:[%s5 + $0x118] sm:$0xff]
        %v692 = vld [vmem:[%s5 + $0x120] sm:$0xff]
        %v693 = vld [vmem:[%s5 + $0x128] sm:$0xff]
        %v694 = vld [vmem:[%s5 + $0x130] sm:$0xff]
        %v695 = vld [vmem:[%s5 + $0x138] sm:$0xff]
        %v696 = vld [vmem:[%s5 + $0x140] sm:$0xff]
        %v697 = vld [vmem:[%s5 + $0x148] sm:$0xff]
        %v698 = vld [vmem:[%s5 + $0x150] sm:$0xff]
        %v699 = vld [vmem:[%s5 + $0x158] sm:$0xff]
        %v700 = vld [vmem:[%s5 + $0x160] sm:$0xff]
        %v701 = vld [vmem:[%s5 + $0x168] sm:$0xff]
        %v702 = vld [vmem:[%s5 + $0x170] sm:$0xff]
        %v703 = vld [vmem:[%s5 + $0x178] sm:$0xff]
        %v704 = vld [vmem:[%s5 + $0x180] sm:$0xff]
        %v705 = vld [vmem:[%s5 + $0x188] sm:$0xff]
        %v706 = vld [vmem:[%s5 + $0x190] sm:$0xff]
        %v707 = vld [vmem:[%s5 + $0x198] sm:$0xff]
        %v708 = vld [vmem:[%s5 + $0x1a0] sm:$0xff]
        %v709 = vld [vmem:[%s5 + $0x1a8] sm:$0xff]
        %v710 = vld [vmem:[%s5 + $0x1b0] sm:$0xff]
        %v711 = vld [vmem:[%s5 + $0x1b8] sm:$0xff]
        %v712 = vld [vmem:[%s5 + $0x1c0] sm:$0xff]
        %v713 = vld [vmem:[%s5 + $0x1c8] sm:$0xff]
        %v714 = vld [vmem:[%s5 + $0x1d0] sm:$0xff]
        %v715 = vld [vmem:[%s5 + $0x1d8] sm:$0xff]
        %v716 = vld [vmem:[%s5 + $0x1e0] sm:$0xff]
        %v717 = vld [vmem:[%s5 + $0x1e8] sm:$0xff]
        %v718 = vld [vmem:[%s5 + $0x1f0] sm:$0xff]
        %v719 = vld [vmem:[%s5 + $0x1f8] sm:$0xff]
        %720 = vmatprep.subr.mxu0 %v657
        %721 = vmatpush1.msra.mxu0 %v656
        %722 = vmatprep.subr.mxu0 %v659
        %723 = vmatpush1.msra.mxu0 %v658
        %724 = vmatprep.subr.mxu0 %v661
        %725 = vmatpush1.msra.mxu0 %v660
        %726 = vmatprep.subr.mxu0 %v663
        %727 = vmatpush1.msra.mxu0 %v662
        %728 = vmatprep.subr.mxu0 %v665
        %729 = vmatpush1.msra.mxu0 %v664
        %730 = vmatprep.subr.mxu0 %v667
        %731 = vmatpush1.msra.mxu0 %v666
        %732 = vmatprep.subr.mxu0 %v669
        %733 = vmatpush1.msra.mxu0 %v668
        %734 = vmatprep.subr.mxu0 %v671
        %735 = vmatpush1.msra.mxu0 %v670
        %736 = vmatprep.subr.mxu0 %v673
        %737 = vmatpush1.msra.mxu0 %v672
        %738 = vmatprep.subr.mxu0 %v675
        %739 = vmatpush1.msra.mxu0 %v674
        %740 = vmatprep.subr.mxu0 %v677
        %741 = vmatpush1.msra.mxu0 %v676
        %742 = vmatprep.subr.mxu0 %v679
        %743 = vmatpush1.msra.mxu0 %v678
        %744 = vmatprep.subr.mxu0 %v681
        %745 = vmatpush1.msra.mxu0 %v680
        %746 = vmatprep.subr.mxu0 %v683
        %747 = vmatpush1.msra.mxu0 %v682
        %748 = vmatprep.subr.mxu0 %v685
        %749 = vmatpush1.msra.mxu0 %v684
        %750 = vmatprep.subr.mxu0 %v687
        %751 = vmatpush1.msra.mxu0 %v686
        %752 = vmatprep.subr.mxu0 %v689
        %753 = vmatpush1.msra.mxu0 %v688
        %754 = vmatprep.subr.mxu0 %v691
        %755 = vmatpush1.msra.mxu0 %v690
        %756 = vmatprep.subr.mxu0 %v693
        %757 = vmatpush1.msra.mxu0 %v692
        %758 = vmatprep.subr.mxu0 %v695
        %759 = vmatpush1.msra.mxu0 %v694
        %760 = vmatprep.subr.mxu0 %v697
        %761 = vmatpush1.msra.mxu0 %v696
        %762 = vmatprep.subr.mxu0 %v699
        %763 = vmatpush1.msra.mxu0 %v698
        %764 = vmatprep.subr.mxu0 %v701
        %765 = vmatpush1.msra.mxu0 %v700
        %766 = vmatprep.subr.mxu0 %v703
        %767 = vmatpush1.msra.mxu0 %v702
        %768 = vmatprep.subr.mxu0 %v705
        %769 = vmatpush1.msra.mxu0 %v704
        %770 = vmatprep.subr.mxu0 %v707
        %771 = vmatpush1.msra.mxu0 %v706
        %772 = vmatprep.subr.mxu0 %v709
        %773 = vmatpush1.msra.mxu0 %v708
        %774 = vmatprep.subr.mxu0 %v711
        %775 = vmatpush1.msra.mxu0 %v710
        %776 = vmatprep.subr.mxu0 %v713
        %777 = vmatpush1.msra.mxu0 %v712
        %778 = vmatprep.subr.mxu0 %v715
        %779 = vmatpush1.msra.mxu0 %v714
        %780 = vmatprep.subr.mxu0 %v717
        %781 = vmatpush1.msra.mxu0 %v716
        %782 = vmatprep.subr.mxu0 %v719
        %783 = vmatpush1.msra.mxu0 %v718
        %784 = vmatprep.mubr.f32.mxu0 %v582
        %785 = vmatmul.mubr.f32.gmra.mrb[0].mxu0 %v581
        %v786 = vpop.f32.mrb[0].mxu0
        %v787 = vadd.f32 0.0, %v786
        %v788 = vpop.f32.mrb[0].mxu0
        %v789 = vadd.f32 0.0, %v788
        %790 = vdwg.mxu0
        %v791 = vld [vmem:[%s6] sm:$0xff]
        %v792 = vld [vmem:[%s6 + $0x8] sm:$0xff]
        %v793 = vld [vmem:[%s6 + $0x10] sm:$0xff]
        %v794 = vld [vmem:[%s6 + $0x18] sm:$0xff]
        %v795 = vld [vmem:[%s6 + $0x20] sm:$0xff]
        %v796 = vld [vmem:[%s6 + $0x28] sm:$0xff]
        %v797 = vld [vmem:[%s6 + $0x30] sm:$0xff]
        %v798 = vld [vmem:[%s6 + $0x38] sm:$0xff]
        %v799 = vld [vmem:[%s6 + $0x40] sm:$0xff]
        %v800 = vld [vmem:[%s6 + $0x48] sm:$0xff]
        %v801 = vld [vmem:[%s6 + $0x50] sm:$0xff]
        %v802 = vld [vmem:[%s6 + $0x58] sm:$0xff]
        %v803 = vld [vmem:[%s6 + $0x60] sm:$0xff]
        %v804 = vld [vmem:[%s6 + $0x68] sm:$0xff]
        %v805 = vld [vmem:[%s6 + $0x70] sm:$0xff]
        %v806 = vld [vmem:[%s6 + $0x78] sm:$0xff]
        %v807 = vld [vmem:[%s6 + $0x80] sm:$0xff]
        %v808 = vld [vmem:[%s6 + $0x88] sm:$0xff]
        %v809 = vld [vmem:[%s6 + $0x90] sm:$0xff]
        %v810 = vld [vmem:[%s6 + $0x98] sm:$0xff]
        %v811 = vld [vmem:[%s6 + $0xa0] sm:$0xff]
        %v812 = vld [vmem:[%s6 + $0xa8] sm:$0xff]
        %v813 = vld [vmem:[%s6 + $0xb0] sm:$0xff]
        %v814 = vld [vmem:[%s6 + $0xb8] sm:$0xff]
        %v815 = vld [vmem:[%s6 + $0xc0] sm:$0xff]
        %v816 = vld [vmem:[%s6 + $0xc8] sm:$0xff]
        %v817 = vld [vmem:[%s6 + $0xd0] sm:$0xff]
        %v818 = vld [vmem:[%s6 + $0xd8] sm:$0xff]
        %v819 = vld [vmem:[%s6 + $0xe0] sm:$0xff]
        %v820 = vld [vmem:[%s6 + $0xe8] sm:$0xff]
        %v821 = vld [vmem:[%s6 + $0xf0] sm:$0xff]
        %v822 = vld [vmem:[%s6 + $0xf8] sm:$0xff]
        %v823 = vld [vmem:[%s6 + $0x100] sm:$0xff]
        %v824 = vld [vmem:[%s6 + $0x108] sm:$0xff]
        %v825 = vld [vmem:[%s6 + $0x110] sm:$0xff]
        %v826 = vld [vmem:[%s6 + $0x118] sm:$0xff]
        %v827 = vld [vmem:[%s7] sm:$0xff]
        %v828 = vld [vmem:[%s7 + $0x8] sm:$0xff]
        %v829 = vld [vmem:[%s7 + $0x10] sm:$0xff]
        %v830 = vld [vmem:[%s7 + $0x18] sm:$0xff]
        %v831 = vld [vmem:[%s7 + $0x20] sm:$0xff]
        %v832 = vld [vmem:[%s7 + $0x28] sm:$0xff]
        %v833 = vld [vmem:[%s7 + $0x30] sm:$0xff]
        %v834 = vld [vmem:[%s7 + $0x38] sm:$0xff]
        %v835 = vld [vmem:[%s7 + $0x40] sm:$0xff]
        %v836 = vld [vmem:[%s7 + $0x48] sm:$0xff]
        %v837 = vld [vmem:[%s7 + $0x50] sm:$0xff]
        %v838 = vld [vmem:[%s7 + $0x58] sm:$0xff]
        %v839 = vld [vmem:[%s7 + $0x60] sm:$0xff]
        %v840 = vld [vmem:[%s7 + $0x68] sm:$0xff]
        %v841 = vld [vmem:[%s7 + $0x70] sm:$0xff]
        %v842 = vld [vmem:[%s7 + $0x78] sm:$0xff]
        %v843 = vld [vmem:[%s7 + $0x80] sm:$0xff]
        %v844 = vld [vmem:[%s7 + $0x88] sm:$0xff]
        %v845 = vld [vmem:[%s7 + $0x90] sm:$0xff]
        %v846 = vld [vmem:[%s7 + $0x98] sm:$0xff]
        %v847 = vld [vmem:[%s7 + $0xa0] sm:$0xff]
        %v848 = vld [vmem:[%s7 + $0xa8] sm:$0xff]
        %v849 = vld [vmem:[%s7 + $0xb0] sm:$0xff]
        %v850 = vld [vmem:[%s7 + $0xb8] sm:$0xff]
        %v851 = vld [vmem:[%s7 + $0xc0] sm:$0xff]
        %v852 = vld [vmem:[%s7 + $0xc8] sm:$0xff]
        %v853 = vld [vmem:[%s7 + $0xd0] sm:$0xff]
        %v854 = vld [vmem:[%s7 + $0xd8] sm:$0xff]
        %v855 = vld [vmem:[%s7 + $0xe0] sm:$0xff]
        %v856 = vld [vmem:[%s7 + $0xe8] sm:$0xff]
        %v857 = vld [vmem:[%s7 + $0xf0] sm:$0xff]
        %v858 = vld [vmem:[%s7 + $0xf8] sm:$0xff]
        %v859 = vld [vmem:[%s7 + $0x100] sm:$0xff]
        %v860 = vld [vmem:[%s7 + $0x108] sm:$0xff]
        %v861 = vld [vmem:[%s7 + $0x110] sm:$0xff]
        %v862 = vld [vmem:[%s7 + $0x118] sm:$0xff]
        %vm863 = vcmask 130048
        %v865 = vsel %vm863, %v789, 0
        %867 = vmatprep.subr.mxu0 %v828
        %868 = vmatpush1.msra.mxu0 %v827
        %869 = vmatprep.subr.mxu0 %v830
        %870 = vmatpush1.msra.mxu0 %v829
        %871 = vmatprep.subr.mxu0 %v832
        %872 = vmatpush1.msra.mxu0 %v831
        %873 = vmatprep.subr.mxu0 %v834
        %874 = vmatpush1.msra.mxu0 %v833
        %875 = vmatprep.subr.mxu0 %v836
        %876 = vmatpush1.msra.mxu0 %v835
        %877 = vmatprep.subr.mxu0 %v838
        %878 = vmatpush1.msra.mxu0 %v837
        %879 = vmatprep.subr.mxu0 %v840
        %880 = vmatpush1.msra.mxu0 %v839
        %881 = vmatprep.subr.mxu0 %v842
        %882 = vmatpush1.msra.mxu0 %v841
        %883 = vmatprep.subr.mxu0 %v844
        %884 = vmatpush1.msra.mxu0 %v843
        %885 = vmatprep.subr.mxu0 %v846
        %886 = vmatpush1.msra.mxu0 %v845
        %887 = vmatprep.subr.mxu0 %v848
        %888 = vmatpush1.msra.mxu0 %v847
        %889 = vmatprep.subr.mxu0 %v850
        %890 = vmatpush1.msra.mxu0 %v849
        %891 = vmatprep.subr.mxu0 %v852
        %892 = vmatpush1.msra.mxu0 %v851
        %893 = vmatprep.subr.mxu0 %v854
        %894 = vmatpush1.msra.mxu0 %v853
        %895 = vmatprep.subr.mxu0 %v856
        %896 = vmatpush1.msra.mxu0 %v855
        %897 = vmatprep.subr.mxu0 %v858
        %898 = vmatpush1.msra.mxu0 %v857
        %899 = vmatprep.subr.mxu0 %v860
        %900 = vmatpush1.msra.mxu0 %v859
        %901 = vmatprep.subr.mxu0 %v862
        %902 = vmatpush1.msra.mxu0 %v861
        %903 = vmatprep.subr.mxu0 0.0
        %904 = vmatpush1.msra.mxu0 0.0
        %905 = vmatprep.subr.mxu0 0.0
        %906 = vmatpush1.msra.mxu0 0.0
        %907 = vmatprep.subr.mxu0 0.0
        %908 = vmatpush1.msra.mxu0 0.0
        %909 = vmatprep.subr.mxu0 0.0
        %910 = vmatpush1.msra.mxu0 0.0
        %911 = vmatprep.subr.mxu0 0.0
        %912 = vmatpush1.msra.mxu0 0.0
        %913 = vmatprep.subr.mxu0 0.0
        %914 = vmatpush1.msra.mxu0 0.0
        %915 = vmatprep.subr.mxu0 0.0
        %916 = vmatpush1.msra.mxu0 0.0
        %917 = vmatprep.subr.mxu0 0.0
        %918 = vmatpush1.msra.mxu0 0.0
        %919 = vmatprep.subr.mxu0 0.0
        %920 = vmatpush1.msra.mxu0 0.0
        %921 = vmatprep.subr.mxu0 0.0
        %922 = vmatpush1.msra.mxu0 0.0
        %923 = vmatprep.subr.mxu0 0.0
        %924 = vmatpush1.msra.mxu0 0.0
        %925 = vmatprep.subr.mxu0 0.0
        %926 = vmatpush1.msra.mxu0 0.0
        %927 = vmatprep.subr.mxu0 0.0
        %928 = vmatpush1.msra.mxu0 0.0
        %929 = vmatprep.subr.mxu0 0.0
        %930 = vmatpush1.msra.mxu0 0.0
        %931 = vmatprep.mubr.f32.mxu0 %v865
        %932 = vmatmul.mubr.f32.gmra.mrb[0].mxu0 %v787
        %v933 = vpop.f32.mrb[0].mxu0
        %v934 = vadd.f32 0.0, %v933
        %v935 = vpop.f32.mrb[0].mxu0
        %v936 = vadd.f32 0.0, %v935
        %937 = vdwg.mxu0
        %v939 = vsel %vm863, %v654, 0
        %941 = vmatprep.subr.mxu0 %v792
        %942 = vmatpush1.msra.mxu0 %v791
        %943 = vmatprep.subr.mxu0 %v794
        %944 = vmatpush1.msra.mxu0 %v793
        %945 = vmatprep.subr.mxu0 %v796
        %946 = vmatpush1.msra.mxu0 %v795
        %947 = vmatprep.subr.mxu0 %v798
        %948 = vmatpush1.msra.mxu0 %v797
        %949 = vmatprep.subr.mxu0 %v800
        %950 = vmatpush1.msra.mxu0 %v799
        %951 = vmatprep.subr.mxu0 %v802
        %952 = vmatpush1.msra.mxu0 %v801
        %953 = vmatprep.subr.mxu0 %v804
        %954 = vmatpush1.msra.mxu0 %v803
        %955 = vmatprep.subr.mxu0 %v806
        %956 = vmatpush1.msra.mxu0 %v805
        %957 = vmatprep.subr.mxu0 %v808
        %958 = vmatpush1.msra.mxu0 %v807
        %959 = vmatprep.subr.mxu0 %v810
        %960 = vmatpush1.msra.mxu0 %v809
        %961 = vmatprep.subr.mxu0 %v812
        %962 = vmatpush1.msra.mxu0 %v811
        %963 = vmatprep.subr.mxu0 %v814
        %964 = vmatpush1.msra.mxu0 %v813
        %965 = vmatprep.subr.mxu0 %v816
        %966 = vmatpush1.msra.mxu0 %v815
        %967 = vmatprep.subr.mxu0 %v818
        %968 = vmatpush1.msra.mxu0 %v817
        %969 = vmatprep.subr.mxu0 %v820
        %970 = vmatpush1.msra.mxu0 %v819
        %971 = vmatprep.subr.mxu0 %v822
        %972 = vmatpush1.msra.mxu0 %v821
        %973 = vmatprep.subr.mxu0 %v824
        %974 = vmatpush1.msra.mxu0 %v823
        %975 = vmatprep.subr.mxu0 %v826
        %976 = vmatpush1.msra.mxu0 %v825
        %977 = vmatprep.subr.mxu0 0.0
        %978 = vmatpush1.msra.mxu0 0.0
        %979 = vmatprep.subr.mxu0 0.0
        %980 = vmatpush1.msra.mxu0 0.0
        %981 = vmatprep.subr.mxu0 0.0
        %982 = vmatpush1.msra.mxu0 0.0
        %983 = vmatprep.subr.mxu0 0.0
        %984 = vmatpush1.msra.mxu0 0.0
        %985 = vmatprep.subr.mxu0 0.0
        %986 = vmatpush1.msra.mxu0 0.0
        %987 = vmatprep.subr.mxu0 0.0
        %988 = vmatpush1.msra.mxu0 0.0
        %989 = vmatprep.subr.mxu0 0.0
        %990 = vmatpush1.msra.mxu0 0.0
        %991 = vmatprep.subr.mxu0 0.0
        %992 = vmatpush1.msra.mxu0 0.0
        %993 = vmatprep.subr.mxu0 0.0
        %994 = vmatpush1.msra.mxu0 0.0
        %995 = vmatprep.subr.mxu0 0.0
        %996 = vmatpush1.msra.mxu0 0.0
        %997 = vmatprep.subr.mxu0 0.0
        %998 = vmatpush1.msra.mxu0 0.0
        %999 = vmatprep.subr.mxu0 0.0
        %1000 = vmatpush1.msra.mxu0 0.0
        %1001 = vmatprep.subr.mxu0 0.0
        %1002 = vmatpush1.msra.mxu0 0.0
        %1003 = vmatprep.subr.mxu0 0.0
        %1004 = vmatpush1.msra.mxu0 0.0
        %1005 = vmatprep.mubr.f32.mxu0 %v939
        %1006 = vmatmul.mubr.f32.gmra.mrb[0].mxu0 %v652
        %v1007 = vpop.f32.mrb[0].mxu0
        %v1008 = vadd.f32 %v934, %v1007
        %v1009 = vpop.f32.mrb[0].mxu0
        %v1010 = vadd.f32 %v936, %v1009
        %1011 = vdwg.mxu0
        %1012 = vmatprep.subr.mxu0 %v792
        %1013 = vmatpush1.msra.mxu0 %v791
        %1014 = vmatprep.subr.mxu0 %v794
        %1015 = vmatpush1.msra.mxu0 %v793
        %1016 = vmatprep.subr.mxu0 %v796
        %1017 = vmatpush1.msra.mxu0 %v795
        %1018 = vmatprep.subr.mxu0 %v798
        %1019 = vmatpush1.msra.mxu0 %v797
        %1020 = vmatprep.subr.mxu0 %v800
        %1021 = vmatpush1.msra.mxu0 %v799
        %1022 = vmatprep.subr.mxu0 %v802
        %1023 = vmatpush1.msra.mxu0 %v801
        %1024 = vmatprep.subr.mxu0 %v804
        %1025 = vmatpush1.msra.mxu0 %v803
        %1026 = vmatprep.subr.mxu0 %v806
        %1027 = vmatpush1.msra.mxu0 %v805
        %1028 = vmatprep.subr.mxu0 %v808
        %1029 = vmatpush1.msra.mxu0 %v807
        %1030 = vmatprep.subr.mxu0 %v810
        %1031 = vmatpush1.msra.mxu0 %v809
        %1032 = vmatprep.subr.mxu0 %v812
        %1033 = vmatpush1.msra.mxu0 %v811
        %1034 = vmatprep.subr.mxu0 %v814
        %1035 = vmatpush1.msra.mxu0 %v813
        %1036 = vmatprep.subr.mxu0 %v816
        %1037 = vmatpush1.msra.mxu0 %v815
        %1038 = vmatprep.subr.mxu0 %v818
        %1039 = vmatpush1.msra.mxu0 %v817
        %1040 = vmatprep.subr.mxu0 %v820
        %1041 = vmatpush1.msra.mxu0 %v819
        %1042 = vmatprep.subr.mxu0 %v822
        %1043 = vmatpush1.msra.mxu0 %v821
        %1044 = vmatprep.subr.mxu0 %v824
        %1045 = vmatpush1.msra.mxu0 %v823
        %1046 = vmatprep.subr.mxu0 %v826
        %1047 = vmatpush1.msra.mxu0 %v825
        %1048 = vmatprep.subr.mxu0 0.0
        %1049 = vmatpush1.msra.mxu0 0.0
        %1050 = vmatprep.subr.mxu0 0.0
        %1051 = vmatpush1.msra.mxu0 0.0
        %1052 = vmatprep.subr.mxu0 0.0
        %1053 = vmatpush1.msra.mxu0 0.0
        %1054 = vmatprep.subr.mxu0 0.0
        %1055 = vmatpush1.msra.mxu0 0.0
        %1056 = vmatprep.subr.mxu0 0.0
        %1057 = vmatpush1.msra.mxu0 0.0
        %1058 = vmatprep.subr.mxu0 0.0
        %1059 = vmatpush1.msra.mxu0 0.0
        %1060 = vmatprep.subr.mxu0 0.0
        %1061 = vmatpush1.msra.mxu0 0.0
        %1062 = vmatprep.subr.mxu0 0.0
        %1063 = vmatpush1.msra.mxu0 0.0
        %1064 = vmatprep.subr.mxu0 0.0
        %1065 = vmatpush1.msra.mxu0 0.0
        %1066 = vmatprep.subr.mxu0 0.0
        %1067 = vmatpush1.msra.mxu0 0.0
        %1068 = vmatprep.subr.mxu0 0.0
        %1069 = vmatpush1.msra.mxu0 0.0
        %1070 = vmatprep.subr.mxu0 0.0
        %1071 = vmatpush1.msra.mxu0 0.0
        %1072 = vmatprep.subr.mxu0 0.0
        %1073 = vmatpush1.msra.mxu0 0.0
        %1074 = vmatprep.subr.mxu0 0.0
        %1075 = vmatpush1.msra.mxu0 0.0
        %1076 = vmatprep.mubr.f32.mxu0 %v865
        %1077 = vmatmul.mubr.f32.gmra.mrb[0].mxu0 %v787
        %v1078 = vpop.f32.mrb[0].mxu0
        %v1079 = vadd.f32 0.0, %v1078
        %v1080 = vpop.f32.mrb[0].mxu0
        %v1081 = vadd.f32 0.0, %v1080
        %1082 = vdwg.mxu0
        %1083 = vmatprep.subr.mxu0 %v828
        %1084 = vmatpush1.msra.mxu0 %v827
        %1085 = vmatprep.subr.mxu0 %v830
        %1086 = vmatpush1.msra.mxu0 %v829
        %1087 = vmatprep.subr.mxu0 %v832
        %1088 = vmatpush1.msra.mxu0 %v831
        %1089 = vmatprep.subr.mxu0 %v834
        %1090 = vmatpush1.msra.mxu0 %v833
        %1091 = vmatprep.subr.mxu0 %v836
        %1092 = vmatpush1.msra.mxu0 %v835
        %1093 = vmatprep.subr.mxu0 %v838
        %1094 = vmatpush1.msra.mxu0 %v837
        %1095 = vmatprep.subr.mxu0 %v840
        %1096 = vmatpush1.msra.mxu0 %v839
        %1097 = vmatprep.subr.mxu0 %v842
        %1098 = vmatpush1.msra.mxu0 %v841
        %1099 = vmatprep.subr.mxu0 %v844
        %1100 = vmatpush1.msra.mxu0 %v843
        %1101 = vmatprep.subr.mxu0 %v846
        %1102 = vmatpush1.msra.mxu0 %v845
        %1103 = vmatprep.subr.mxu0 %v848
        %1104 = vmatpush1.msra.mxu0 %v847
        %1105 = vmatprep.subr.mxu0 %v850
        %1106 = vmatpush1.msra.mxu0 %v849
        %1107 = vmatprep.subr.mxu0 %v852
        %1108 = vmatpush1.msra.mxu0 %v851
        %1109 = vmatprep.subr.mxu0 %v854
        %1110 = vmatpush1.msra.mxu0 %v853
        %1111 = vmatprep.subr.mxu0 %v856
        %1112 = vmatpush1.msra.mxu0 %v855
        %1113 = vmatprep.subr.mxu0 %v858
        %1114 = vmatpush1.msra.mxu0 %v857
        %1115 = vmatprep.subr.mxu0 %v860
        %1116 = vmatpush1.msra.mxu0 %v859
        %1117 = vmatprep.subr.mxu0 %v862
        %1118 = vmatpush1.msra.mxu0 %v861
        %1119 = vmatprep.subr.mxu0 0.0
        %1120 = vmatpush1.msra.mxu0 0.0
        %1121 = vmatprep.subr.mxu0 0.0
        %1122 = vmatpush1.msra.mxu0 0.0
        %1123 = vmatprep.subr.mxu0 0.0
        %1124 = vmatpush1.msra.mxu0 0.0
        %1125 = vmatprep.subr.mxu0 0.0
        %1126 = vmatpush1.msra.mxu0 0.0
        %1127 = vmatprep.subr.mxu0 0.0
        %1128 = vmatpush1.msra.mxu0 0.0
        %1129 = vmatprep.subr.mxu0 0.0
        %1130 = vmatpush1.msra.mxu0 0.0
        %1131 = vmatprep.subr.mxu0 0.0
        %1132 = vmatpush1.msra.mxu0 0.0
        %1133 = vmatprep.subr.mxu0 0.0
        %1134 = vmatpush1.msra.mxu0 0.0
        %1135 = vmatprep.subr.mxu0 0.0
        %1136 = vmatpush1.msra.mxu0 0.0
        %1137 = vmatprep.subr.mxu0 0.0
        %1138 = vmatpush1.msra.mxu0 0.0
        %1139 = vmatprep.subr.mxu0 0.0
        %1140 = vmatpush1.msra.mxu0 0.0
        %1141 = vmatprep.subr.mxu0 0.0
        %1142 = vmatpush1.msra.mxu0 0.0
        %1143 = vmatprep.subr.mxu0 0.0
        %1144 = vmatpush1.msra.mxu0 0.0
        %1145 = vmatprep.subr.mxu0 0.0
        %1146 = vmatpush1.msra.mxu0 0.0
        %1147 = vmatprep.mubr.f32.mxu0 %v939
        %1148 = vmatmul.mubr.f32.gmra.mrb[0].mxu0 %v652
        %v1149 = vpop.f32.mrb[0].mxu0
        %v1150 = vadd.f32 0.0, %v1149
        %v1151 = vpop.f32.mrb[0].mxu0
        %v1152 = vadd.f32 0.0, %v1151
        %1153 = vdwg.mxu0
        %v1154 = vsub.f32 %v1079, %v1150
        %v1155 = vsub.f32 %v1081, %v1152
        %v1156 = vld [vmem:[%s3] sm:$0xf]
        %s1157 = scalar_lea.vmem %s3, 4
        %v1158 = vld [vmem:[%s1157] sm:$0xf]
        %v1161 = vunpack.c.l.s4 1983009808
        %v1162 = vunpack.c.0.s8 %v1161
        %v1163 = vlaneseq
        %v1164 = vshrl.u32 %v1163, 7
        %v1165 = vsub.s32 %v1162, %v1164
        %v1166 = vrot.slane %v1156, %v1165
        %v1167 = vcombine.high %v1166, %v1166
        %v1170 = vmul.f32 %v1008, %v1166
        %v1171 = vmul.f32 %v1010, %v1167
        %v1174 = vunpack.c.l.s4 1983009808
        %v1175 = vunpack.c.0.s8 %v1174
        %v1176 = vlaneseq
        %v1177 = vshrl.u32 %v1176, 7
        %v1178 = vsub.s32 %v1175, %v1177
        %v1179 = vrot.slane %v1158, %v1178
        %v1180 = vcombine.high %v1179, %v1179
        %v1183 = vmul.f32 %v1154, %v1179
        %v1184 = vmul.f32 %v1155, %v1180
        %v1185 = vsub.f32 %v1170, %v1183
        %v1186 = vsub.f32 %v1171, %v1184
        %v1187 = vmul.f32 %v1008, %v1179
        %v1188 = vmul.f32 %v1010, %v1180
        %v1189 = vmul.f32 %v1154, %v1166
        %v1190 = vmul.f32 %v1155, %v1167
        %v1191 = vadd.f32 %v1187, %v1189
        %v1192 = vadd.f32 %v1188, %v1190
        %v1193 = vld [vmem:[%s8] sm:$0xff]
        %v1194 = vld [vmem:[%s8 + $0x8] sm:$0xff]
        %v1195 = vld [vmem:[%s8 + $0x10] sm:$0xff]
        %v1196 = vld [vmem:[%s8 + $0x18] sm:$0xff]
        %v1197 = vld [vmem:[%s8 + $0x20] sm:$0xff]
        %v1198 = vld [vmem:[%s8 + $0x28] sm:$0xff]
        %v1199 = vld [vmem:[%s8 + $0x30] sm:$0xff]
        %v1200 = vld [vmem:[%s8 + $0x38] sm:$0xff]
        %v1201 = vld [vmem:[%s8 + $0x40] sm:$0xff]
        %v1202 = vld [vmem:[%s8 + $0x48] sm:$0xff]
        %v1203 = vld [vmem:[%s8 + $0x50] sm:$0xff]
        %v1204 = vld [vmem:[%s8 + $0x58] sm:$0xff]
        %v1205 = vld [vmem:[%s8 + $0x60] sm:$0xff]
        %v1206 = vld [vmem:[%s8 + $0x68] sm:$0xff]
        %v1207 = vld [vmem:[%s8 + $0x70] sm:$0xff]
        %v1208 = vld [vmem:[%s8 + $0x78] sm:$0xff]
        %v1209 = vld [vmem:[%s8 + $0x80] sm:$0xff]
        %v1210 = vld [vmem:[%s8 + $0x88] sm:$0xff]
        %v1211 = vld [vmem:[%s8 + $0x90] sm:$0xff]
        %v1212 = vld [vmem:[%s8 + $0x98] sm:$0xff]
        %v1213 = vld [vmem:[%s8 + $0xa0] sm:$0xff]
        %v1214 = vld [vmem:[%s8 + $0xa8] sm:$0xff]
        %v1215 = vld [vmem:[%s8 + $0xb0] sm:$0xff]
        %v1216 = vld [vmem:[%s8 + $0xb8] sm:$0xff]
        %v1217 = vld [vmem:[%s8 + $0xc0] sm:$0xff]
        %v1218 = vld [vmem:[%s8 + $0xc8] sm:$0xff]
        %v1219 = vld [vmem:[%s8 + $0xd0] sm:$0xff]
        %v1220 = vld [vmem:[%s8 + $0xd8] sm:$0xff]
        %v1221 = vld [vmem:[%s8 + $0xe0] sm:$0xff]
        %v1222 = vld [vmem:[%s8 + $0xe8] sm:$0xff]
        %v1223 = vld [vmem:[%s8 + $0xf0] sm:$0xff]
        %v1224 = vld [vmem:[%s8 + $0xf8] sm:$0xff]
        %v1225 = vld [vmem:[%s8 + $0x100] sm:$0xff]
        %v1226 = vld [vmem:[%s8 + $0x108] sm:$0xff]
        %v1227 = vld [vmem:[%s8 + $0x110] sm:$0xff]
        %v1228 = vld [vmem:[%s8 + $0x118] sm:$0xff]
        %v1230 = vsel %vm863, %v1186, 0
        %1232 = vmatprep.subr.mxu0 %v1194
        %1233 = vmatpush1.msra.mxu0 %v1193
        %1234 = vmatprep.subr.mxu0 %v1196
        %1235 = vmatpush1.msra.mxu0 %v1195
        %1236 = vmatprep.subr.mxu0 %v1198
        %1237 = vmatpush1.msra.mxu0 %v1197
        %1238 = vmatprep.subr.mxu0 %v1200
        %1239 = vmatpush1.msra.mxu0 %v1199
        %1240 = vmatprep.subr.mxu0 %v1202
        %1241 = vmatpush1.msra.mxu0 %v1201
        %1242 = vmatprep.subr.mxu0 %v1204
        %1243 = vmatpush1.msra.mxu0 %v1203
        %1244 = vmatprep.subr.mxu0 %v1206
        %1245 = vmatpush1.msra.mxu0 %v1205
        %1246 = vmatprep.subr.mxu0 %v1208
        %1247 = vmatpush1.msra.mxu0 %v1207
        %1248 = vmatprep.subr.mxu0 %v1210
        %1249 = vmatpush1.msra.mxu0 %v1209
        %1250 = vmatprep.subr.mxu0 %v1212
        %1251 = vmatpush1.msra.mxu0 %v1211
        %1252 = vmatprep.subr.mxu0 %v1214
        %1253 = vmatpush1.msra.mxu0 %v1213
        %1254 = vmatprep.subr.mxu0 %v1216
        %1255 = vmatpush1.msra.mxu0 %v1215
        %1256 = vmatprep.subr.mxu0 %v1218
        %1257 = vmatpush1.msra.mxu0 %v1217
        %1258 = vmatprep.subr.mxu0 %v1220
        %1259 = vmatpush1.msra.mxu0 %v1219
        %1260 = vmatprep.subr.mxu0 %v1222
        %1261 = vmatpush1.msra.mxu0 %v1221
        %1262 = vmatprep.subr.mxu0 %v1224
        %1263 = vmatpush1.msra.mxu0 %v1223
        %1264 = vmatprep.subr.mxu0 %v1226
        %1265 = vmatpush1.msra.mxu0 %v1225
        %1266 = vmatprep.subr.mxu0 %v1228
        %1267 = vmatpush1.msra.mxu0 %v1227
        %1268 = vmatprep.subr.mxu0 0.0
        %1269 = vmatpush1.msra.mxu0 0.0
        %1270 = vmatprep.subr.mxu0 0.0
        %1271 = vmatpush1.msra.mxu0 0.0
        %1272 = vmatprep.subr.mxu0 0.0
        %1273 = vmatpush1.msra.mxu0 0.0
        %1274 = vmatprep.subr.mxu0 0.0
        %1275 = vmatpush1.msra.mxu0 0.0
        %1276 = vmatprep.subr.mxu0 0.0
        %1277 = vmatpush1.msra.mxu0 0.0
        %1278 = vmatprep.subr.mxu0 0.0
        %1279 = vmatpush1.msra.mxu0 0.0
        %1280 = vmatprep.subr.mxu0 0.0
        %1281 = vmatpush1.msra.mxu0 0.0
        %1282 = vmatprep.subr.mxu0 0.0
        %1283 = vmatpush1.msra.mxu0 0.0
        %1284 = vmatprep.subr.mxu0 0.0
        %1285 = vmatpush1.msra.mxu0 0.0
        %1286 = vmatprep.subr.mxu0 0.0
        %1287 = vmatpush1.msra.mxu0 0.0
        %1288 = vmatprep.subr.mxu0 0.0
        %1289 = vmatpush1.msra.mxu0 0.0
        %1290 = vmatprep.subr.mxu0 0.0
        %1291 = vmatpush1.msra.mxu0 0.0
        %1292 = vmatprep.subr.mxu0 0.0
        %1293 = vmatpush1.msra.mxu0 0.0
        %1294 = vmatprep.subr.mxu0 0.0
        %1295 = vmatpush1.msra.mxu0 0.0
        %1296 = vmatprep.mubr.f32.mxu0 %v1230
        %1297 = vmatmul.mubr.f32.gmra.mrb[0].mxu0 %v1185
        %v1298 = vpop.f32.mrb[0].mxu0
        %v1299 = vadd.f32 0.0, %v1298
        %v1300 = vpop.f32.mrb[0].mxu0
        %v1301 = vadd.f32 0.0, %v1300
        %1302 = vdwg.mxu0
        %v1303 = vld [vmem:[%s9] sm:$0xff]
        %v1304 = vld [vmem:[%s9 + $0x8] sm:$0xff]
        %v1305 = vld [vmem:[%s9 + $0x10] sm:$0xff]
        %v1306 = vld [vmem:[%s9 + $0x18] sm:$0xff]
        %v1307 = vld [vmem:[%s9 + $0x20] sm:$0xff]
        %v1308 = vld [vmem:[%s9 + $0x28] sm:$0xff]
        %v1309 = vld [vmem:[%s9 + $0x30] sm:$0xff]
        %v1310 = vld [vmem:[%s9 + $0x38] sm:$0xff]
        %v1311 = vld [vmem:[%s9 + $0x40] sm:$0xff]
        %v1312 = vld [vmem:[%s9 + $0x48] sm:$0xff]
        %v1313 = vld [vmem:[%s9 + $0x50] sm:$0xff]
        %v1314 = vld [vmem:[%s9 + $0x58] sm:$0xff]
        %v1315 = vld [vmem:[%s9 + $0x60] sm:$0xff]
        %v1316 = vld [vmem:[%s9 + $0x68] sm:$0xff]
        %v1317 = vld [vmem:[%s9 + $0x70] sm:$0xff]
        %v1318 = vld [vmem:[%s9 + $0x78] sm:$0xff]
        %v1319 = vld [vmem:[%s9 + $0x80] sm:$0xff]
        %v1320 = vld [vmem:[%s9 + $0x88] sm:$0xff]
        %v1321 = vld [vmem:[%s9 + $0x90] sm:$0xff]
        %v1322 = vld [vmem:[%s9 + $0x98] sm:$0xff]
        %v1323 = vld [vmem:[%s9 + $0xa0] sm:$0xff]
        %v1324 = vld [vmem:[%s9 + $0xa8] sm:$0xff]
        %v1325 = vld [vmem:[%s9 + $0xb0] sm:$0xff]
        %v1326 = vld [vmem:[%s9 + $0xb8] sm:$0xff]
        %v1327 = vld [vmem:[%s9 + $0xc0] sm:$0xff]
        %v1328 = vld [vmem:[%s9 + $0xc8] sm:$0xff]
        %v1329 = vld [vmem:[%s9 + $0xd0] sm:$0xff]
        %v1330 = vld [vmem:[%s9 + $0xd8] sm:$0xff]
        %v1331 = vld [vmem:[%s9 + $0xe0] sm:$0xff]
        %v1332 = vld [vmem:[%s9 + $0xe8] sm:$0xff]
        %v1333 = vld [vmem:[%s9 + $0xf0] sm:$0xff]
        %v1334 = vld [vmem:[%s9 + $0xf8] sm:$0xff]
        %v1335 = vld [vmem:[%s9 + $0x100] sm:$0xff]
        %v1336 = vld [vmem:[%s9 + $0x108] sm:$0xff]
        %v1337 = vld [vmem:[%s9 + $0x110] sm:$0xff]
        %v1338 = vld [vmem:[%s9 + $0x118] sm:$0xff]
        %v1340 = vsel %vm863, %v1192, 0
        %1342 = vmatprep.subr.mxu0 %v1304
        %1343 = vmatpush1.msra.mxu0 %v1303
        %1344 = vmatprep.subr.mxu0 %v1306
        %1345 = vmatpush1.msra.mxu0 %v1305
        %1346 = vmatprep.subr.mxu0 %v1308
        %1347 = vmatpush1.msra.mxu0 %v1307
        %1348 = vmatprep.subr.mxu0 %v1310
        %1349 = vmatpush1.msra.mxu0 %v1309
        %1350 = vmatprep.subr.mxu0 %v1312
        %1351 = vmatpush1.msra.mxu0 %v1311
        %1352 = vmatprep.subr.mxu0 %v1314
        %1353 = vmatpush1.msra.mxu0 %v1313
        %1354 = vmatprep.subr.mxu0 %v1316
        %1355 = vmatpush1.msra.mxu0 %v1315
        %1356 = vmatprep.subr.mxu0 %v1318
        %1357 = vmatpush1.msra.mxu0 %v1317
        %1358 = vmatprep.subr.mxu0 %v1320
        %1359 = vmatpush1.msra.mxu0 %v1319
        %1360 = vmatprep.subr.mxu0 %v1322
        %1361 = vmatpush1.msra.mxu0 %v1321
        %1362 = vmatprep.subr.mxu0 %v1324
        %1363 = vmatpush1.msra.mxu0 %v1323
        %1364 = vmatprep.subr.mxu0 %v1326
        %1365 = vmatpush1.msra.mxu0 %v1325
        %1366 = vmatprep.subr.mxu0 %v1328
        %1367 = vmatpush1.msra.mxu0 %v1327
        %1368 = vmatprep.subr.mxu0 %v1330
        %1369 = vmatpush1.msra.mxu0 %v1329
        %1370 = vmatprep.subr.mxu0 %v1332
        %1371 = vmatpush1.msra.mxu0 %v1331
        %1372 = vmatprep.subr.mxu0 %v1334
        %1373 = vmatpush1.msra.mxu0 %v1333
        %1374 = vmatprep.subr.mxu0 %v1336
        %1375 = vmatpush1.msra.mxu0 %v1335
        %1376 = vmatprep.subr.mxu0 %v1338
        %1377 = vmatpush1.msra.mxu0 %v1337
        %1378 = vmatprep.subr.mxu0 0.0
        %1379 = vmatpush1.msra.mxu0 0.0
        %1380 = vmatprep.subr.mxu0 0.0
        %1381 = vmatpush1.msra.mxu0 0.0
        %1382 = vmatprep.subr.mxu0 0.0
        %1383 = vmatpush1.msra.mxu0 0.0
        %1384 = vmatprep.subr.mxu0 0.0
        %1385 = vmatpush1.msra.mxu0 0.0
        %1386 = vmatprep.subr.mxu0 0.0
        %1387 = vmatpush1.msra.mxu0 0.0
        %1388 = vmatprep.subr.mxu0 0.0
        %1389 = vmatpush1.msra.mxu0 0.0
        %1390 = vmatprep.subr.mxu0 0.0
        %1391 = vmatpush1.msra.mxu0 0.0
        %1392 = vmatprep.subr.mxu0 0.0
        %1393 = vmatpush1.msra.mxu0 0.0
        %1394 = vmatprep.subr.mxu0 0.0
        %1395 = vmatpush1.msra.mxu0 0.0
        %1396 = vmatprep.subr.mxu0 0.0
        %1397 = vmatpush1.msra.mxu0 0.0
        %1398 = vmatprep.subr.mxu0 0.0
        %1399 = vmatpush1.msra.mxu0 0.0
        %1400 = vmatprep.subr.mxu0 0.0
        %1401 = vmatpush1.msra.mxu0 0.0
        %1402 = vmatprep.subr.mxu0 0.0
        %1403 = vmatpush1.msra.mxu0 0.0
        %1404 = vmatprep.subr.mxu0 0.0
        %1405 = vmatpush1.msra.mxu0 0.0
        %1406 = vmatprep.mubr.f32.mxu0 %v1340
        %1407 = vmatmul.mubr.f32.gmra.mrb[0].mxu0 %v1191
        %v1408 = vpop.f32.mrb[0].mxu0
        %v1409 = vadd.f32 0.0, %v1408
        %v1410 = vpop.f32.mrb[0].mxu0
        %v1411 = vadd.f32 0.0, %v1410
        %1412 = vdwg.mxu0
        %v1413 = vsub.f32 %v1299, %v1409
        %v1414 = vsub.f32 %v1301, %v1411
        %1415 = vmatprep.subr.mxu0 %v1194
        %1416 = vmatpush1.msra.mxu0 %v1193
        %1417 = vmatprep.subr.mxu0 %v1196
        %1418 = vmatpush1.msra.mxu0 %v1195
        %1419 = vmatprep.subr.mxu0 %v1198
        %1420 = vmatpush1.msra.mxu0 %v1197
        %1421 = vmatprep.subr.mxu0 %v1200
        %1422 = vmatpush1.msra.mxu0 %v1199
        %1423 = vmatprep.subr.mxu0 %v1202
        %1424 = vmatpush1.msra.mxu0 %v1201
        %1425 = vmatprep.subr.mxu0 %v1204
        %1426 = vmatpush1.msra.mxu0 %v1203
        %1427 = vmatprep.subr.mxu0 %v1206
        %1428 = vmatpush1.msra.mxu0 %v1205
        %1429 = vmatprep.subr.mxu0 %v1208
        %1430 = vmatpush1.msra.mxu0 %v1207
        %1431 = vmatprep.subr.mxu0 %v1210
        %1432 = vmatpush1.msra.mxu0 %v1209
        %1433 = vmatprep.subr.mxu0 %v1212
        %1434 = vmatpush1.msra.mxu0 %v1211
        %1435 = vmatprep.subr.mxu0 %v1214
        %1436 = vmatpush1.msra.mxu0 %v1213
        %1437 = vmatprep.subr.mxu0 %v1216
        %1438 = vmatpush1.msra.mxu0 %v1215
        %1439 = vmatprep.subr.mxu0 %v1218
        %1440 = vmatpush1.msra.mxu0 %v1217
        %1441 = vmatprep.subr.mxu0 %v1220
        %1442 = vmatpush1.msra.mxu0 %v1219
        %1443 = vmatprep.subr.mxu0 %v1222
        %1444 = vmatpush1.msra.mxu0 %v1221
        %1445 = vmatprep.subr.mxu0 %v1224
        %1446 = vmatpush1.msra.mxu0 %v1223
        %1447 = vmatprep.subr.mxu0 %v1226
        %1448 = vmatpush1.msra.mxu0 %v1225
        %1449 = vmatprep.subr.mxu0 %v1228
        %1450 = vmatpush1.msra.mxu0 %v1227
        %1451 = vmatprep.subr.mxu0 0.0
        %1452 = vmatpush1.msra.mxu0 0.0
        %1453 = vmatprep.subr.mxu0 0.0
        %1454 = vmatpush1.msra.mxu0 0.0
        %1455 = vmatprep.subr.mxu0 0.0
        %1456 = vmatpush1.msra.mxu0 0.0
        %1457 = vmatprep.subr.mxu0 0.0
        %1458 = vmatpush1.msra.mxu0 0.0
        %1459 = vmatprep.subr.mxu0 0.0
        %1460 = vmatpush1.msra.mxu0 0.0
        %1461 = vmatprep.subr.mxu0 0.0
        %1462 = vmatpush1.msra.mxu0 0.0
        %1463 = vmatprep.subr.mxu0 0.0
        %1464 = vmatpush1.msra.mxu0 0.0
        %1465 = vmatprep.subr.mxu0 0.0
        %1466 = vmatpush1.msra.mxu0 0.0
        %1467 = vmatprep.subr.mxu0 0.0
        %1468 = vmatpush1.msra.mxu0 0.0
        %1469 = vmatprep.subr.mxu0 0.0
        %1470 = vmatpush1.msra.mxu0 0.0
        %1471 = vmatprep.subr.mxu0 0.0
        %1472 = vmatpush1.msra.mxu0 0.0
        %1473 = vmatprep.subr.mxu0 0.0
        %1474 = vmatpush1.msra.mxu0 0.0
        %1475 = vmatprep.subr.mxu0 0.0
        %1476 = vmatpush1.msra.mxu0 0.0
        %1477 = vmatprep.subr.mxu0 0.0
        %1478 = vmatpush1.msra.mxu0 0.0
        %1479 = vmatprep.mubr.f32.mxu0 %v1340
        %1480 = vmatmul.mubr.f32.gmra.mrb[0].mxu0 %v1191
        %v1481 = vpop.f32.mrb[0].mxu0
        %v1482 = vadd.f32 0.0, %v1481
        %v1483 = vpop.f32.mrb[0].mxu0
        %v1484 = vadd.f32 0.0, %v1483
        %1485 = vdwg.mxu0
        %1486 = vmatprep.subr.mxu0 %v1304
        %1487 = vmatpush1.msra.mxu0 %v1303
        %1488 = vmatprep.subr.mxu0 %v1306
        %1489 = vmatpush1.msra.mxu0 %v1305
        %1490 = vmatprep.subr.mxu0 %v1308
        %1491 = vmatpush1.msra.mxu0 %v1307
        %1492 = vmatprep.subr.mxu0 %v1310
        %1493 = vmatpush1.msra.mxu0 %v1309
        %1494 = vmatprep.subr.mxu0 %v1312
        %1495 = vmatpush1.msra.mxu0 %v1311
        %1496 = vmatprep.subr.mxu0 %v1314
        %1497 = vmatpush1.msra.mxu0 %v1313
        %1498 = vmatprep.subr.mxu0 %v1316
        %1499 = vmatpush1.msra.mxu0 %v1315
        %1500 = vmatprep.subr.mxu0 %v1318
        %1501 = vmatpush1.msra.mxu0 %v1317
        %1502 = vmatprep.subr.mxu0 %v1320
        %1503 = vmatpush1.msra.mxu0 %v1319
        %1504 = vmatprep.subr.mxu0 %v1322
        %1505 = vmatpush1.msra.mxu0 %v1321
        %1506 = vmatprep.subr.mxu0 %v1324
        %1507 = vmatpush1.msra.mxu0 %v1323
        %1508 = vmatprep.subr.mxu0 %v1326
        %1509 = vmatpush1.msra.mxu0 %v1325
        %1510 = vmatprep.subr.mxu0 %v1328
        %1511 = vmatpush1.msra.mxu0 %v1327
        %1512 = vmatprep.subr.mxu0 %v1330
        %1513 = vmatpush1.msra.mxu0 %v1329
        %1514 = vmatprep.subr.mxu0 %v1332
        %1515 = vmatpush1.msra.mxu0 %v1331
        %1516 = vmatprep.subr.mxu0 %v1334
        %1517 = vmatpush1.msra.mxu0 %v1333
        %1518 = vmatprep.subr.mxu0 %v1336
        %1519 = vmatpush1.msra.mxu0 %v1335
        %1520 = vmatprep.subr.mxu0 %v1338
        %1521 = vmatpush1.msra.mxu0 %v1337
        %1522 = vmatprep.subr.mxu0 0.0
        %1523 = vmatpush1.msra.mxu0 0.0
        %1524 = vmatprep.subr.mxu0 0.0
        %1525 = vmatpush1.msra.mxu0 0.0
        %1526 = vmatprep.subr.mxu0 0.0
        %1527 = vmatpush1.msra.mxu0 0.0
        %1528 = vmatprep.subr.mxu0 0.0
        %1529 = vmatpush1.msra.mxu0 0.0
        %1530 = vmatprep.subr.mxu0 0.0
        %1531 = vmatpush1.msra.mxu0 0.0
        %1532 = vmatprep.subr.mxu0 0.0
        %1533 = vmatpush1.msra.mxu0 0.0
        %1534 = vmatprep.subr.mxu0 0.0
        %1535 = vmatpush1.msra.mxu0 0.0
        %1536 = vmatprep.subr.mxu0 0.0
        %1537 = vmatpush1.msra.mxu0 0.0
        %1538 = vmatprep.subr.mxu0 0.0
        %1539 = vmatpush1.msra.mxu0 0.0
        %1540 = vmatprep.subr.mxu0 0.0
        %1541 = vmatpush1.msra.mxu0 0.0
        %1542 = vmatprep.subr.mxu0 0.0
        %1543 = vmatpush1.msra.mxu0 0.0
        %1544 = vmatprep.subr.mxu0 0.0
        %1545 = vmatpush1.msra.mxu0 0.0
        %1546 = vmatprep.subr.mxu0 0.0
        %1547 = vmatpush1.msra.mxu0 0.0
        %1548 = vmatprep.subr.mxu0 0.0
        %1549 = vmatpush1.msra.mxu0 0.0
        %1550 = vmatprep.mubr.f32.mxu0 %v1230
        %1551 = vmatmul.mubr.f32.gmra.mrb[0].mxu0 %v1185
        %v1552 = vpop.f32.mrb[0].mxu0
        %v1553 = vadd.f32 %v1482, %v1552
        %v1554 = vpop.f32.mrb[0].mxu0
        %v1555 = vadd.f32 %v1484, %v1554
        %1556 = vdwg.mxu0
        %v1557 = vld [vmem:[#allocation2] sm:$0xff]
        %v1558 = vld [vmem:[#allocation2 + $0x8] sm:$0xff]
        %v1559 = vld [vmem:[#allocation2 + $0x10] sm:$0xff]
        %v1560 = vld [vmem:[#allocation2 + $0x18] sm:$0xff]
        %v1561 = vld [vmem:[#allocation2 + $0x20] sm:$0xff]
        %v1562 = vld [vmem:[#allocation2 + $0x28] sm:$0xff]
        %v1563 = vld [vmem:[#allocation2 + $0x30] sm:$0xff]
        %v1564 = vld [vmem:[#allocation2 + $0x38] sm:$0xff]
        %v1565 = vld [vmem:[#allocation2 + $0x40] sm:$0xff]
        %v1566 = vld [vmem:[#allocation2 + $0x48] sm:$0xff]
        %v1567 = vld [vmem:[#allocation2 + $0x50] sm:$0xff]
        %v1568 = vld [vmem:[#allocation2 + $0x58] sm:$0xff]
        %v1569 = vld [vmem:[#allocation2 + $0x60] sm:$0xff]
        %v1570 = vld [vmem:[#allocation2 + $0x68] sm:$0xff]
        %v1571 = vld [vmem:[#allocation2 + $0x70] sm:$0xff]
        %v1572 = vld [vmem:[#allocation2 + $0x78] sm:$0xff]
        %v1573 = vld [vmem:[#allocation2 + $0x80] sm:$0xff]
        %v1574 = vld [vmem:[#allocation2 + $0x88] sm:$0xff]
        %v1575 = vld [vmem:[#allocation2 + $0x90] sm:$0xff]
        %v1576 = vld [vmem:[#allocation2 + $0x98] sm:$0xff]
        %v1577 = vld [vmem:[#allocation2 + $0xa0] sm:$0xff]
        %v1578 = vld [vmem:[#allocation2 + $0xa8] sm:$0xff]
        %v1579 = vld [vmem:[#allocation2 + $0xb0] sm:$0xff]
        %v1580 = vld [vmem:[#allocation2 + $0xb8] sm:$0xff]
        %v1581 = vld [vmem:[#allocation2 + $0xc0] sm:$0xff]
        %v1582 = vld [vmem:[#allocation2 + $0xc8] sm:$0xff]
        %v1583 = vld [vmem:[#allocation2 + $0xd0] sm:$0xff]
        %v1584 = vld [vmem:[#allocation2 + $0xd8] sm:$0xff]
        %v1585 = vld [vmem:[#allocation2 + $0xe0] sm:$0xff]
        %v1586 = vld [vmem:[#allocation2 + $0xe8] sm:$0xff]
        %v1587 = vld [vmem:[#allocation2 + $0xf0] sm:$0xff]
        %v1588 = vld [vmem:[#allocation2 + $0xf8] sm:$0xff]
        %v1589 = vld [vmem:[#allocation2 + $0x100] sm:$0xff]
        %v1590 = vld [vmem:[#allocation2 + $0x108] sm:$0xff]
        %v1591 = vld [vmem:[#allocation2 + $0x110] sm:$0xff]
        %v1592 = vld [vmem:[#allocation2 + $0x118] sm:$0xff]
        %v1594 = vsel %vm863, %v1414, 0
        %1596 = vmatprep.subr.mxu0 %v1558
        %1597 = vmatpush1.msra.mxu0 %v1557
        %1598 = vmatprep.subr.mxu0 %v1560
        %1599 = vmatpush1.msra.mxu0 %v1559
        %1600 = vmatprep.subr.mxu0 %v1562
        %1601 = vmatpush1.msra.mxu0 %v1561
        %1602 = vmatprep.subr.mxu0 %v1564
        %1603 = vmatpush1.msra.mxu0 %v1563
        %1604 = vmatprep.subr.mxu0 %v1566
        %1605 = vmatpush1.msra.mxu0 %v1565
        %1606 = vmatprep.subr.mxu0 %v1568
        %1607 = vmatpush1.msra.mxu0 %v1567
        %1608 = vmatprep.subr.mxu0 %v1570
        %1609 = vmatpush1.msra.mxu0 %v1569
        %1610 = vmatprep.subr.mxu0 %v1572
        %1611 = vmatpush1.msra.mxu0 %v1571
        %1612 = vmatprep.subr.mxu0 %v1574
        %1613 = vmatpush1.msra.mxu0 %v1573
        %1614 = vmatprep.subr.mxu0 %v1576
        %1615 = vmatpush1.msra.mxu0 %v1575
        %1616 = vmatprep.subr.mxu0 %v1578
        %1617 = vmatpush1.msra.mxu0 %v1577
        %1618 = vmatprep.subr.mxu0 %v1580
        %1619 = vmatpush1.msra.mxu0 %v1579
        %1620 = vmatprep.subr.mxu0 %v1582
        %1621 = vmatpush1.msra.mxu0 %v1581
        %1622 = vmatprep.subr.mxu0 %v1584
        %1623 = vmatpush1.msra.mxu0 %v1583
        %1624 = vmatprep.subr.mxu0 %v1586
        %1625 = vmatpush1.msra.mxu0 %v1585
        %1626 = vmatprep.subr.mxu0 %v1588
        %1627 = vmatpush1.msra.mxu0 %v1587
        %1628 = vmatprep.subr.mxu0 %v1590
        %1629 = vmatpush1.msra.mxu0 %v1589
        %1630 = vmatprep.subr.mxu0 %v1592
        %1631 = vmatpush1.msra.mxu0 %v1591
        %1632 = vmatprep.subr.mxu0 0.0
        %1633 = vmatpush1.msra.mxu0 0.0
        %1634 = vmatprep.subr.mxu0 0.0
        %1635 = vmatpush1.msra.mxu0 0.0
        %1636 = vmatprep.subr.mxu0 0.0
        %1637 = vmatpush1.msra.mxu0 0.0
        %1638 = vmatprep.subr.mxu0 0.0
        %1639 = vmatpush1.msra.mxu0 0.0
        %1640 = vmatprep.subr.mxu0 0.0
        %1641 = vmatpush1.msra.mxu0 0.0
        %1642 = vmatprep.subr.mxu0 0.0
        %1643 = vmatpush1.msra.mxu0 0.0
        %1644 = vmatprep.subr.mxu0 0.0
        %1645 = vmatpush1.msra.mxu0 0.0
        %1646 = vmatprep.subr.mxu0 0.0
        %1647 = vmatpush1.msra.mxu0 0.0
        %1648 = vmatprep.subr.mxu0 0.0
        %1649 = vmatpush1.msra.mxu0 0.0
        %1650 = vmatprep.subr.mxu0 0.0
        %1651 = vmatpush1.msra.mxu0 0.0
        %1652 = vmatprep.subr.mxu0 0.0
        %1653 = vmatpush1.msra.mxu0 0.0
        %1654 = vmatprep.subr.mxu0 0.0
        %1655 = vmatpush1.msra.mxu0 0.0
        %1656 = vmatprep.subr.mxu0 0.0
        %1657 = vmatpush1.msra.mxu0 0.0
        %1658 = vmatprep.subr.mxu0 0.0
        %1659 = vmatpush1.msra.mxu0 0.0
        %1660 = vmatprep.mubr.f32.mxu0 %v1594
        %1661 = vmatmul.mubr.f32.gmra.mrb[0].mxu0 %v1413
        %v1662 = vpop.f32.mrb[0].mxu0
        %v1663 = vadd.f32 0.0, %v1662
        %v1664 = vpop.f32.mrb[0].mxu0
        %v1665 = vadd.f32 0.0, %v1664
        %1666 = vdwg.mxu0
        %v1667 = vld [vmem:[#allocation5] sm:$0xff]
        %v1668 = vld [vmem:[#allocation5 + $0x8] sm:$0xff]
        %v1669 = vld [vmem:[#allocation5 + $0x10] sm:$0xff]
        %v1670 = vld [vmem:[#allocation5 + $0x18] sm:$0xff]
        %v1671 = vld [vmem:[#allocation5 + $0x20] sm:$0xff]
        %v1672 = vld [vmem:[#allocation5 + $0x28] sm:$0xff]
        %v1673 = vld [vmem:[#allocation5 + $0x30] sm:$0xff]
        %v1674 = vld [vmem:[#allocation5 + $0x38] sm:$0xff]
        %v1675 = vld [vmem:[#allocation5 + $0x40] sm:$0xff]
        %v1676 = vld [vmem:[#allocation5 + $0x48] sm:$0xff]
        %v1677 = vld [vmem:[#allocation5 + $0x50] sm:$0xff]
        %v1678 = vld [vmem:[#allocation5 + $0x58] sm:$0xff]
        %v1679 = vld [vmem:[#allocation5 + $0x60] sm:$0xff]
        %v1680 = vld [vmem:[#allocation5 + $0x68] sm:$0xff]
        %v1681 = vld [vmem:[#allocation5 + $0x70] sm:$0xff]
        %v1682 = vld [vmem:[#allocation5 + $0x78] sm:$0xff]
        %v1683 = vld [vmem:[#allocation5 + $0x80] sm:$0xff]
        %v1684 = vld [vmem:[#allocation5 + $0x88] sm:$0xff]
        %v1685 = vld [vmem:[#allocation5 + $0x90] sm:$0xff]
        %v1686 = vld [vmem:[#allocation5 + $0x98] sm:$0xff]
        %v1687 = vld [vmem:[#allocation5 + $0xa0] sm:$0xff]
        %v1688 = vld [vmem:[#allocation5 + $0xa8] sm:$0xff]
        %v1689 = vld [vmem:[#allocation5 + $0xb0] sm:$0xff]
        %v1690 = vld [vmem:[#allocation5 + $0xb8] sm:$0xff]
        %v1691 = vld [vmem:[#allocation5 + $0xc0] sm:$0xff]
        %v1692 = vld [vmem:[#allocation5 + $0xc8] sm:$0xff]
        %v1693 = vld [vmem:[#allocation5 + $0xd0] sm:$0xff]
        %v1694 = vld [vmem:[#allocation5 + $0xd8] sm:$0xff]
        %v1695 = vld [vmem:[#allocation5 + $0xe0] sm:$0xff]
        %v1696 = vld [vmem:[#allocation5 + $0xe8] sm:$0xff]
        %v1697 = vld [vmem:[#allocation5 + $0xf0] sm:$0xff]
        %v1698 = vld [vmem:[#allocation5 + $0xf8] sm:$0xff]
        %v1699 = vld [vmem:[#allocation5 + $0x100] sm:$0xff]
        %v1700 = vld [vmem:[#allocation5 + $0x108] sm:$0xff]
        %v1701 = vld [vmem:[#allocation5 + $0x110] sm:$0xff]
        %v1702 = vld [vmem:[#allocation5 + $0x118] sm:$0xff]
        %v1704 = vsel %vm863, %v1555, 0
        %1706 = vmatprep.subr.mxu0 %v1668
        %1707 = vmatpush1.msra.mxu0 %v1667
        %1708 = vmatprep.subr.mxu0 %v1670
        %1709 = vmatpush1.msra.mxu0 %v1669
        %1710 = vmatprep.subr.mxu0 %v1672
        %1711 = vmatpush1.msra.mxu0 %v1671
        %1712 = vmatprep.subr.mxu0 %v1674
        %1713 = vmatpush1.msra.mxu0 %v1673
        %1714 = vmatprep.subr.mxu0 %v1676
        %1715 = vmatpush1.msra.mxu0 %v1675
        %1716 = vmatprep.subr.mxu0 %v1678
        %1717 = vmatpush1.msra.mxu0 %v1677
        %1718 = vmatprep.subr.mxu0 %v1680
        %1719 = vmatpush1.msra.mxu0 %v1679
        %1720 = vmatprep.subr.mxu0 %v1682
        %1721 = vmatpush1.msra.mxu0 %v1681
        %1722 = vmatprep.subr.mxu0 %v1684
        %1723 = vmatpush1.msra.mxu0 %v1683
        %1724 = vmatprep.subr.mxu0 %v1686
        %1725 = vmatpush1.msra.mxu0 %v1685
        %1726 = vmatprep.subr.mxu0 %v1688
        %1727 = vmatpush1.msra.mxu0 %v1687
        %1728 = vmatprep.subr.mxu0 %v1690
        %1729 = vmatpush1.msra.mxu0 %v1689
        %1730 = vmatprep.subr.mxu0 %v1692
        %1731 = vmatpush1.msra.mxu0 %v1691
        %1732 = vmatprep.subr.mxu0 %v1694
        %1733 = vmatpush1.msra.mxu0 %v1693
        %1734 = vmatprep.subr.mxu0 %v1696
        %1735 = vmatpush1.msra.mxu0 %v1695
        %1736 = vmatprep.subr.mxu0 %v1698
        %1737 = vmatpush1.msra.mxu0 %v1697
        %1738 = vmatprep.subr.mxu0 %v1700
        %1739 = vmatpush1.msra.mxu0 %v1699
        %1740 = vmatprep.subr.mxu0 %v1702
        %1741 = vmatpush1.msra.mxu0 %v1701
        %1742 = vmatprep.subr.mxu0 0.0
        %1743 = vmatpush1.msra.mxu0 0.0
        %1744 = vmatprep.subr.mxu0 0.0
        %1745 = vmatpush1.msra.mxu0 0.0
        %1746 = vmatprep.subr.mxu0 0.0
        %1747 = vmatpush1.msra.mxu0 0.0
        %1748 = vmatprep.subr.mxu0 0.0
        %1749 = vmatpush1.msra.mxu0 0.0
        %1750 = vmatprep.subr.mxu0 0.0
        %1751 = vmatpush1.msra.mxu0 0.0
        %1752 = vmatprep.subr.mxu0 0.0
        %1753 = vmatpush1.msra.mxu0 0.0
        %1754 = vmatprep.subr.mxu0 0.0
        %1755 = vmatpush1.msra.mxu0 0.0
        %1756 = vmatprep.subr.mxu0 0.0
        %1757 = vmatpush1.msra.mxu0 0.0
        %1758 = vmatprep.subr.mxu0 0.0
        %1759 = vmatpush1.msra.mxu0 0.0
        %1760 = vmatprep.subr.mxu0 0.0
        %1761 = vmatpush1.msra.mxu0 0.0
        %1762 = vmatprep.subr.mxu0 0.0
        %1763 = vmatpush1.msra.mxu0 0.0
        %1764 = vmatprep.subr.mxu0 0.0
        %1765 = vmatpush1.msra.mxu0 0.0
        %1766 = vmatprep.subr.mxu0 0.0
        %1767 = vmatpush1.msra.mxu0 0.0
        %1768 = vmatprep.subr.mxu0 0.0
        %1769 = vmatpush1.msra.mxu0 0.0
        %1770 = vmatprep.mubr.f32.mxu0 %v1704
        %1771 = vmatmul.mubr.f32.gmra.mrb[0].mxu0 %v1553
        %v1772 = vpop.f32.mrb[0].mxu0
        %v1773 = vadd.f32 0.0, %v1772
        %v1774 = vpop.f32.mrb[0].mxu0
        %v1775 = vadd.f32 0.0, %v1774
        %1776 = vdwg.mxu0
        %v1777 = vsub.f32 %v1663, %v1773
        %v1778 = vsub.f32 %v1665, %v1775
        %1779 = vrot.lane.b32.xlu0 %v513, 17
        %v1780 = vpop.permute.xlu0 %1779
        %1781 = vrot.lane.b32.xlu0 %v514, 17
        %v1782 = vpop.permute.xlu0 %1781
        %vm1783 = vcmask 138240
        %v1784 = vsel %vm1783, %v1780, %v1782
        %v1788 = vsel %vm1783, 0.0, %v1780
        %v1789 = vsel %vm1783, %v1782, 0.0
        %v1790 = vld [vmem:[%s2] sm:$0xf]
        %v1792 = vlaneseq
        %v1793 = vshrl.u32 %v1792, 7
        %v1794 = vsub.s32 0, %v1793
        %v1795 = vrot.slane %v1790, %v1794
        %v1796 = vlaneseq
        %v1797 = vshrl.u32 %v1796, 7
        %v1798 = vsub.s32 2, %v1797
        %v1799 = vrot.slane %v1790, %v1798
        %v1802 = vlaneseq
        %v1803 = vshrl.u32 %v1802, 7
        %v1804 = vsub.s32 0, %v1803
        %v1805 = vrot.slane %v1795, %v1804
        %v1806 = vlaneseq
        %v1807 = vshrl.u32 %v1806, 7
        %v1808 = vsub.s32 0, %v1807
        %v1809 = vrot.slane %v1799, %v1808
        %v1810 = vmul.f32 %v1788, %v1805
        %v1811 = vmul.f32 %v1784, %v1809
        %1812 = vset.pattern.permute.xlu0 6
        %1813 = vperm.xlu0 %1812, %v443
        %v1814 = vpop.permute.xlu0 %1813
        %v1816 = vmul.f32 %v1814, %v1810
        %v1817 = vmul.f32 %v1814, %v1811
        %v1818 = vadd.f32 %v1816, 0.0
        %v1819 = vadd.f32 %v1817, 0.0
        %1820 = vset.pattern.permute.xlu0 7
        %1821 = vperm.xlu0 %1820, %v443
        %v1822 = vpop.permute.xlu0 %1821
        %v1824 = vmul.f32 %v1822, %v1788
        %v1825 = vmul.f32 %v1822, %v1784
        %v1826 = vmul.f32 %v1822, %v1789
        %1830 = vrot.lane.b32.xlu0 %v1824, 127
        %v1831 = vpop.permute.xlu0 %1830
        %1832 = vrot.lane.b32.xlu0 %v1825, 127
        %v1833 = vpop.permute.xlu0 %1832
        %1834 = vrot.lane.b32.xlu0 %v1826, 127
        %v1835 = vpop.permute.xlu0 %1834
        %vm1836 = vcmask 1039360
        %v1837 = vsel %vm1836, %v1831, %v1833
        %v1838 = vsel %vm1836, %v1833, %v1835
        %v1841 = vadd.f32 %v1818, %v1837
        %v1842 = vadd.f32 %v1819, %v1838
        %v1843 = vlaneseq
        %v1844 = vshrl.u32 %v1843, 7
        %v1845 = vsub.s32 1, %v1844
        %v1846 = vrot.slane %v1790, %v1845
        %v1847 = vlaneseq
        %v1848 = vshrl.u32 %v1847, 7
        %v1849 = vsub.s32 3, %v1848
        %v1850 = vrot.slane %v1790, %v1849
        %v1853 = vlaneseq
        %v1854 = vshrl.u32 %v1853, 7
        %v1855 = vsub.s32 1, %v1854
        %v1856 = vrot.slane %v1846, %v1855
        %v1857 = vlaneseq
        %v1858 = vshrl.u32 %v1857, 7
        %v1859 = vsub.s32 1, %v1858
        %v1860 = vrot.slane %v1850, %v1859
        %1863 = vrot.lane.b32.xlu0 %v1856, 2
        %v1864 = vpop.permute.xlu0 %1863
        %1865 = vrot.lane.b32.xlu0 %v1860, 2
        %v1866 = vpop.permute.xlu0 %1865
        %vm1867 = vcmask 15360
        %v1868 = vsel %vm1867, %v1864, %v1866
        %v1872 = vmul.f32 %v1788, %v1864
        %v1873 = vmul.f32 %v1784, %v1868
        %v1874 = vmul.f32 %v1789, %v1866
        %1875 = vset.pattern.permute.xlu0 8
        %1876 = vperm.xlu0 %1875, %v443
        %v1877 = vpop.permute.xlu0 %1876
        %v1879 = vmul.f32 %v1877, %v1872
        %v1880 = vmul.f32 %v1877, %v1873
        %v1881 = vmul.f32 %v1877, %v1874
        %1885 = vrot.lane.b32.xlu0 %v1879, 126
        %v1886 = vpop.permute.xlu0 %1885
        %1887 = vrot.lane.b32.xlu0 %v1880, 126
        %v1888 = vpop.permute.xlu0 %1887
        %1889 = vrot.lane.b32.xlu0 %v1881, 126
        %v1890 = vpop.permute.xlu0 %1889
        %vm1891 = vcmask 1031168
        %v1892 = vsel %vm1891, %v1886, %v1888
        %v1893 = vsel %vm1891, %v1888, %v1890
        %v1896 = vadd.f32 %v1841, %v1892
        %v1897 = vadd.f32 %v1842, %v1893
        %1900 = vrot.lane.b32.xlu0 %v1805, 16
        %v1901 = vpop.permute.xlu0 %1900
        %1902 = vrot.lane.b32.xlu0 %v1809, 16
        %v1903 = vpop.permute.xlu0 %1902
        %v1904 = vsel %vm863, %v1901, %v1903
        %v1908 = vmul.f32 %v1788, %v1901
        %v1909 = vmul.f32 %v1784, %v1904
        %v1910 = vmul.f32 %v1789, %v1903
        %1911 = vset.pattern.permute.xlu0 9
        %1912 = vperm.xlu0 %1911, %v443
        %v1913 = vpop.permute.xlu0 %1912
        %v1915 = vmul.f32 %v1913, %v1908
        %v1916 = vmul.f32 %v1913, %v1909
        %v1917 = vmul.f32 %v1913, %v1910
        %1921 = vrot.lane.b32.xlu0 %v1915, 112
        %v1922 = vpop.permute.xlu0 %1921
        %1923 = vrot.lane.b32.xlu0 %v1916, 112
        %v1924 = vpop.permute.xlu0 %1923
        %1925 = vrot.lane.b32.xlu0 %v1917, 112
        %v1926 = vpop.permute.xlu0 %1925
        %vm1927 = vcmask 916480
        %v1928 = vsel %vm1927, %v1922, %v1924
        %v1929 = vsel %vm1927, %v1924, %v1926
        %v1932 = vadd.f32 %v1896, %v1928
        %v1933 = vadd.f32 %v1897, %v1929
        %1934 = vset.pattern.permute.xlu0 10
        %1935 = vperm.xlu0 %1934, %v443
        %v1936 = vpop.permute.xlu0 %1935
        %v1938 = vmul.f32 %v1936, %v513
        %v1939 = vmul.f32 %v1936, %v514
        %v1940 = vadd.f32 %v1932, %v1938
        %v1941 = vadd.f32 %v1933, %v1939
        %1942 = vrot.lane.b32.xlu0 %v1856, 18
        %v1943 = vpop.permute.xlu0 %1942
        %1944 = vrot.lane.b32.xlu0 %v1860, 18
        %v1945 = vpop.permute.xlu0 %1944
        %vm1946 = vcmask 146432
        %v1947 = vsel %vm1946, %v1943, %v1945
        %v1951 = vmul.f32 %v1788, %v1943
        %v1952 = vmul.f32 %v1784, %v1947
        %v1953 = vmul.f32 %v1789, %v1945
        %1954 = vset.pattern.permute.xlu0 11
        %1955 = vperm.xlu0 %1954, %v443
        %v1956 = vpop.permute.xlu0 %1955
        %v1958 = vmul.f32 %v1956, %v1951
        %v1959 = vmul.f32 %v1956, %v1952
        %v1960 = vmul.f32 %v1956, %v1953
        %1964 = vrot.lane.b32.xlu0 %v1958, 110
        %v1965 = vpop.permute.xlu0 %1964
        %1966 = vrot.lane.b32.xlu0 %v1959, 110
        %v1967 = vpop.permute.xlu0 %1966
        %1968 = vrot.lane.b32.xlu0 %v1960, 110
        %v1969 = vpop.permute.xlu0 %1968
        %vm1970 = vcmask 900096
        %v1971 = vsel %vm1970, %v1965, %v1967
        %v1972 = vsel %vm1970, %v1967, %v1969
        %v1975 = vadd.f32 %v1940, %v1971
        %v1976 = vadd.f32 %v1941, %v1972
        %1977 = vrot.lane.b32.xlu0 %v1805, 32
        %v1978 = vpop.permute.xlu0 %1977
        %1979 = vrot.lane.b32.xlu0 %v1809, 32
        %v1980 = vpop.permute.xlu0 %1979
        %vm1981 = vcmask 261120
        %v1982 = vsel %vm1981, %v1978, %v1980
        %v1986 = vmul.f32 %v1788, %v1978
        %v1987 = vmul.f32 %v1784, %v1982
        %v1988 = vmul.f32 %v1789, %v1980
        %1989 = vset.pattern.permute.xlu0 12
        %1990 = vperm.xlu0 %1989, %v443
        %v1991 = vpop.permute.xlu0 %1990
        %v1993 = vmul.f32 %v1991, %v1986
        %v1994 = vmul.f32 %v1991, %v1987
        %v1995 = vmul.f32 %v1991, %v1988
        %1999 = vrot.lane.b32.xlu0 %v1993, 96
        %v2000 = vpop.permute.xlu0 %1999
        %2001 = vrot.lane.b32.xlu0 %v1994, 96
        %v2002 = vpop.permute.xlu0 %2001
        %2003 = vrot.lane.b32.xlu0 %v1995, 96
        %v2004 = vpop.permute.xlu0 %2003
        %vm2005 = vcmask 785408
        %v2006 = vsel %vm2005, %v2000, %v2002
        %v2007 = vsel %vm2005, %v2002, %v2004
        %v2010 = vadd.f32 %v1975, %v2006
        %v2011 = vadd.f32 %v1976, %v2007
        %2012 = vset.pattern.permute.xlu0 13
        %2013 = vperm.xlu0 %2012, %v443
        %v2014 = vpop.permute.xlu0 %2013
        %v2016 = vmul.f32 %v2014, %v1788
        %v2017 = vmul.f32 %v2014, %v1784
        %v2018 = vmul.f32 %v2014, %v1789
        %2022 = vrot.lane.b32.xlu0 %v2016, 95
        %v2023 = vpop.permute.xlu0 %2022
        %2024 = vrot.lane.b32.xlu0 %v2017, 95
        %v2025 = vpop.permute.xlu0 %2024
        %2026 = vrot.lane.b32.xlu0 %v2018, 95
        %v2027 = vpop.permute.xlu0 %2026
        %vm2028 = vcmask 777216
        %v2029 = vsel %vm2028, %v2023, %v2025
        %v2030 = vsel %vm2028, %v2025, %v2027
        %v2033 = vadd.f32 %v2010, %v2029
        %v2034 = vadd.f32 %v2011, %v2030
        %2035 = vrot.lane.b32.xlu0 %v1856, 34
        %v2036 = vpop.permute.xlu0 %2035
        %2037 = vrot.lane.b32.xlu0 %v1860, 34
        %v2038 = vpop.permute.xlu0 %2037
        %vm2039 = vcmask 277504
        %v2040 = vsel %vm2039, %v2036, %v2038
        %v2044 = vmul.f32 %v1788, %v2036
        %v2045 = vmul.f32 %v1784, %v2040
        %v2046 = vmul.f32 %v1789, %v2038
        %2047 = vset.pattern.permute.xlu0 14
        %2048 = vperm.xlu0 %2047, %v443
        %v2049 = vpop.permute.xlu0 %2048
        %v2051 = vmul.f32 %v2049, %v2044
        %v2052 = vmul.f32 %v2049, %v2045
        %v2053 = vmul.f32 %v2049, %v2046
        %2057 = vrot.lane.b32.xlu0 %v2051, 94
        %v2058 = vpop.permute.xlu0 %2057
        %2059 = vrot.lane.b32.xlu0 %v2052, 94
        %v2060 = vpop.permute.xlu0 %2059
        %2061 = vrot.lane.b32.xlu0 %v2053, 94
        %v2062 = vpop.permute.xlu0 %2061
        %vm2063 = vcmask 769024
        %v2064 = vsel %vm2063, %v2058, %v2060
        %v2065 = vsel %vm2063, %v2060, %v2062
        %v2068 = vadd.f32 %v2033, %v2064
        %v2069 = vadd.f32 %v2034, %v2065
        %vm2070 = vcmask 1041408
        %v2071 = vsel %vm2070, %v2068, 0.0
        %v2072 = vrot.slane %v2071, 4
        %v2073 = vadd.f32 %v2071, %v2072
        %v2074 = vrot.slane %v2073, 2
        %v2075 = vadd.f32 %v2073, %v2074
        %v2076 = vrot.slane %v2075, 1
        %v2077 = vadd.f32 %v2075, %v2076
        %v2078 = vsel %vm2070, %v2069, 0.0
        %v2079 = vrot.slane %v2078, 4
        %v2080 = vadd.f32 %v2078, %v2079
        %v2081 = vrot.slane %v2080, 2
        %v2082 = vadd.f32 %v2080, %v2081
        %v2083 = vrot.slane %v2082, 1
        %v2084 = vadd.f32 %v2082, %v2083
        %v2085 = vsel %vm2070, %v1777, 0.0
        %v2086 = vrot.slane %v2085, 4
        %v2087 = vadd.f32 %v2085, %v2086
        %v2088 = vrot.slane %v2087, 2
        %v2089 = vadd.f32 %v2087, %v2088
        %v2090 = vrot.slane %v2089, 1
        %v2091 = vadd.f32 %v2089, %v2090
        %v2092 = vsel %vm2070, %v1778, 0.0
        %v2093 = vrot.slane %v2092, 4
        %v2094 = vadd.f32 %v2092, %v2093
        %v2095 = vrot.slane %v2094, 2
        %v2096 = vadd.f32 %v2094, %v2095
        %v2097 = vrot.slane %v2096, 1
        %v2098 = vadd.f32 %v2096, %v2097
        %v2099 = vadd.f32 %v2077, %v2091
        %v2100 = vadd.f32 %v2084, %v2098
        %v2101 = vmul.f32 %v2099, 0.25
        %v2102 = vmul.f32 %v2100, 0.25
        %v2103 = vsub.f32 %v2068, %v2101
        %v2104 = vsub.f32 %v2069, %v2102
        %v2105 = vsub.f32 %v1777, %v2101
        %v2106 = vsub.f32 %v1778, %v2102
        %v2107 = vmul.f32 %v2103, %v2103
        %v2108 = vmul.f32 %v2104, %v2104
        %v2109 = vsel %vm2070, %v2107, 0.0
        %v2110 = vrot.slane %v2109, 4
        %v2111 = vadd.f32 %v2109, %v2110
        %v2112 = vrot.slane %v2111, 2
        %v2113 = vadd.f32 %v2111, %v2112
        %v2114 = vrot.slane %v2113, 1
        %v2115 = vadd.f32 %v2113, %v2114
        %v2116 = vsel %vm2070, %v2108, 0.0
        %v2117 = vrot.slane %v2116, 4
        %v2118 = vadd.f32 %v2116, %v2117
        %v2119 = vrot.slane %v2118, 2
        %v2120 = vadd.f32 %v2118, %v2119
        %v2121 = vrot.slane %v2120, 1
        %v2122 = vadd.f32 %v2120, %v2121
        %v2123 = vmul.f32 %v2105, %v2105
        %v2124 = vmul.f32 %v2106, %v2106
        %v2125 = vsel %vm2070, %v2123, 0.0
        %v2126 = vrot.slane %v2125, 4
        %v2127 = vadd.f32 %v2125, %v2126
        %v2128 = vrot.slane %v2127, 2
        %v2129 = vadd.f32 %v2127, %v2128
        %v2130 = vrot.slane %v2129, 1
        %v2131 = vadd.f32 %v2129, %v2130
        %v2132 = vsel %vm2070, %v2124, 0.0
        %v2133 = vrot.slane %v2132, 4
        %v2134 = vadd.f32 %v2132, %v2133
        %v2135 = vrot.slane %v2134, 2
        %v2136 = vadd.f32 %v2134, %v2135
        %v2137 = vrot.slane %v2136, 1
        %v2138 = vadd.f32 %v2136, %v2137
        %v2139 = vadd.f32 %v2115, %v2131
        %v2140 = vadd.f32 %v2122, %v2138
        %v2141 = vmul.f32 %v2139, 0.25
        %v2142 = vmul.f32 %v2140, 0.25
        %v2143 = vadd.f32 %v2141, 1e-06
        %v2144 = vadd.f32 %v2142, 1e-06
        %v2145 = vrsqrt.pop %v2143
        %v2146 = vrsqrt.pop %v2144
        %v2147 = vmul.f32 %v2103, %v2145
        %v2148 = vmul.f32 %v2104, %v2146
        %2149 = vset.pattern.permute.xlu0 2
        %2150 = vperm.xlu0 %2149, %v443
        %v2151 = vpop.permute.xlu0 %2150
        %v2153 = vmul.f32 %v2151, %v2147
        %v2154 = vmul.f32 %v2151, %v2148
        %2155 = vset.pattern.permute.xlu0 4
        %2156 = vperm.xlu0 %2155, %v443
        %v2157 = vpop.permute.xlu0 %2156
        %v2159 = vadd.f32 %v2153, %v2157
        %v2160 = vadd.f32 %v2154, %v2157
        %v2163 = vcombine.low %v2159, %v2160
        %v2165 = vunpack.c.l.s4 1983009808
        %v2166 = vunpack.c.0.s8 %v2165
        %v2167 = vlaneseq
        %v2168 = vshrl.u32 %v2167, 7
        %v2169 = vsub.s32 %v2166, %v2168
        %v2170 = vrot.slane %v2163, %v2169
        %2172 = vst [vmem:[%s436] sm:$0xf] %v2170
        %v2173 = vmul.f32 %v2105, %v2145
        %v2174 = vmul.f32 %v2106, %v2146
        %2175 = vset.pattern.permute.xlu0 3
        %2176 = vperm.xlu0 %2175, %v443
        %v2177 = vpop.permute.xlu0 %2176
        %v2179 = vmul.f32 %v2177, %v2173
        %v2180 = vmul.f32 %v2177, %v2174
        %2181 = vset.pattern.permute.xlu0 5
        %2182 = vperm.xlu0 %2181, %v443
        %v2183 = vpop.permute.xlu0 %2182
        %v2185 = vadd.f32 %v2179, %v2183
        %v2186 = vadd.f32 %v2180, %v2183
        %v2189 = vcombine.low %v2185, %v2186
        %v2191 = vunpack.c.l.s4 1983009808
        %v2192 = vunpack.c.0.s8 %v2191
        %v2193 = vlaneseq
        %v2194 = vshrl.u32 %v2193, 7
        %v2195 = vsub.s32 %v2192, %v2194
        %v2196 = vrot.slane %v2189, %v2195
        %s2198 = scalar_lea.vmem %s436, 4 [#allocation7]
        %2199 = vst [vmem:[%s2198] sm:$0xf] %v2196
        %s2200 = sand.u32 %s293, 1
        %s2201 = scalar_lea.sflag [#allocation4], %s2200
        %s2202 = sand.u32 %s293, 1
        %s2203 = smul.addr %s2202, 8
        %s2204 = scalar_lea.vmem [#allocation7], %s2203
        // Predicated region
        $region77: #{tpu_custom_call.1} parent=67 // pred_check
          %p2205 = pneg %p303
        $region78: #{tpu_custom_call.1} parent=67 // pred_check_branch
          %2207 = sbr.rel (%p2205) target = $region80
        $region79: #{tpu_custom_call.1} parent=67 // pred_region
          %s2209 = ssub.s32 128, 128
          %2210 = vsyncadd %s2201, %s2209
          %s2211 = smul.addr %s28, 4
          %s2212 = smul.addr %s2211, 32
          %s2213 = scalar_lea.hbm %s12, %s2212
          %s2214 = sshll.u32 %s2204, 4
          %s2215 = int_to_ptr.vmem [resolvable:$true] %s2214
          %2220 = dma.vmem_to_hbm [thread:$0]  %s2215, 128, %s2213, %s2201, 64, 64, 4
        $region80: #{tpu_custom_call.1} parent=67 // pred_fallthru
          _
      $region68: #{tpu_custom_call.1} parent=5 // pred_fallthru
        _
      %p2221 = scmp.le.s32.totalorder 2, %s23
      // Predicated region
      $region81: #{tpu_custom_call.1} parent=5 // pred_check
        %p2222 = pneg %p2221
      $region82: #{tpu_custom_call.1} parent=5 // pred_check_branch
        %2224 = sbr.rel (%p2222) target = $region84
      $region83: #{tpu_custom_call.1} parent=5 // pred_region
        %s2225 = ssub.s32 %s23, 2
        // Predicated region
        $region85: #{tpu_custom_call.1} parent=83 // pred_check
          %p2226 = pneg %p309
        $region86: #{tpu_custom_call.1} parent=83 // pred_check_branch
          %2228 = sbr.rel (%p2226) target = $region88
        $region87: #{tpu_custom_call.1} parent=83 // pred_region
          %s2229 = sand.u32 %s294, 1
          %s2230 = scalar_lea.sflag [#allocation4], %s2229
          %s2231 = sand.u32 %s294, 1
          %s2232 = smul.addr %s2231, 8
          %s2233 = scalar_lea.vmem [#allocation7], %s2232
          %2234 = dma.done %s2230, 128
        $region88: #{tpu_custom_call.1} parent=83 // pred_fallthru
          _
      $region84: #{tpu_custom_call.1} parent=5 // pred_fallthru
        _
    $region6: #{tpu_custom_call.1} parent=1 // loop_footer
      %s27 = sadd.s32 1, %s23
    $region7: #{tpu_custom_call.1} parent=1 // loop_footer_branch
      %22 = sbr.rel target = $region3
    $region8: #{tpu_custom_call.1} parent=1 // loop_exit
      _
    %2235 = vsyncpa [#allocation3], 1
    %s2236 = scalar_lea.sflag [#allocation3], 1
    %2237 = vsyncpa %s2236, 1
    %2238 = vsyncpa [#allocation6], 1
    %2239 = vsyncpa [#allocation4], 1
    %s2240 = scalar_lea.sflag [#allocation4], 1
    %2241 = vsyncpa %s2240, 1

</llo_original>
